<compile_context>
chip_gen: v6e
topology: v6e:2x2x1
jax: 0.10.0
libtpu: 0.0.40
codegen_flags: <defaults>
</compile_context>

<pallas_src>
import functools

import jax
import jax.numpy as jnp
from jax import lax
from jax.experimental import pallas as pl
from jax.experimental.pallas import tpu as pltpu


def _afm_kernel(femb_ref, fv_ref, fow_ref, aw_ref, ab_ref, ph_ref, pp_ref,
                bias_ref, o_ref, *, chunk):
    E, F, TB = femb_ref.shape
    A = ab_ref.shape[0]
    n_shifts = F // 2
    even_f = (F % 2 == 0)
    n_chunks = TB // chunk

    # ---- hoist every SMEM scalar read: issued once, reused by all chunks and
    # pair blocks (no per-block sld + splat duplication).
    aw = [[aw_ref[e, a] for a in range(A)] for e in range(E)]
    ab = [ab_ref[a] for a in range(A)]
    ph = [ph_ref[a] for a in range(A)]
    pp = [pp_ref[e] for e in range(E)]
    bias = bias_ref[0]

    def pair_block(fev_rows, s):
        """Dense pair block for circular field distance s.

        Row f pairs field f with field (f - s) mod F; every unordered pair
        {i, j} appears in exactly one shift block (twice in the s = F/2 block
        when F is even).  The shifted operand is a sublane rotation on the
        XLU slot, so the VALU only sees fully dense (F, C) rows.
        """
        bi = [fr * pltpu.roll(fr, shift=s, axis=0) for fr in fev_rows]
        # attention logit per pair row:  h . relu(bi @ W + b)
        score = None
        for a in range(A):
            t = bi[0] * aw[0][a]
            for e in range(1, E):
                t = t + bi[e] * aw[e][a]
            t = jnp.maximum(t + ab[a], 0.0)                       # relu
            term = t * ph[a]
            score = term if score is None else score + term       # (F, C)
        # projection p . bi, folded per pair row
        proj = bi[0] * pp[0]
        for e in range(1, E):
            proj = proj + bi[e] * pp[e]                            # (F, C)
        return score, proj

    def chunk_body(c, carry):
        off = pl.multiple_of(c * chunk, chunk)
        fv = fv_ref[:, pl.ds(off, chunk)]                          # (F, C)
        fow = fow_ref[:, pl.ds(off, chunk)]                        # (F, C)

        # first-order term: sum_f w1[idx_f] * value_f
        y_first = jnp.sum(fow * fv, axis=0, keepdims=True)         # (1, C)

        # value-scaled embeddings, batch on lanes, one (F, C) slab per emb dim
        fev_rows = [femb_ref[e, :, pl.ds(off, chunk)] * fv for e in range(E)]

        # ---- online softmax over all F*(F-1)/2 pairs, one dense shift block
        # at a time; live set = one block + three (1, C) rows.
        m = None
        denom = None
        acc = None
        for s in range(1, n_shifts + 1):
            score, proj = pair_block(fev_rows, s)
            blk_max = score.max(axis=0, keepdims=True)             # (1, C)
            if m is None:
                m_new = blk_max
                w = jnp.exp(score - m_new)                         # (F, C)
                if even_f and s == n_shifts:
                    w = w * 0.5            # s == F/2 lists each pair twice
                denom = jnp.sum(w, axis=0, keepdims=True)
                acc = jnp.sum(w * proj, axis=0, keepdims=True)
            else:
                m_new = jnp.maximum(m, blk_max)
                alpha = jnp.exp(m - m_new)
                w = jnp.exp(score - m_new)
                if even_f and s == n_shifts:
                    w = w * 0.5
                denom = alpha * denom + jnp.sum(w, axis=0, keepdims=True)
                acc = alpha * acc + jnp.sum(w * proj, axis=0, keepdims=True)
            m = m_new

        attn_out = acc / denom                                     # (1, C)

        # bias + first order + attention term, then sigmoid (binary output).
        # TODO(synk): OutputLayer(1, 'binary') is treated as a plain Sigmoid.
        y = bias + y_first + attn_out                              # (1, C)
        o_ref[:, pl.ds(off, chunk)] = 1.0 / (1.0 + jnp.exp(-y))
        return carry

    lax.fori_loop(0, n_chunks, chunk_body, 0)


def _round_up(x, m):
    return ((x + m - 1) // m) * m


_CHUNK = 256   # lanes per register-bounded inner chunk (multiple of 128)


def afm_forward_pallas(feat_index, feat_value, params, *, block_b=1024):
    B, F = feat_index.shape
    E = params["emb"].shape[1]
    A = params["attention_w"].shape[1]
    assert F >= 2, "AFM needs at least two feature fields"

    # Batch tile: big enough to amortize the ~0.35us per-grid-step overhead,
    # but capped so the 'parallel' batch grid keeps >= 2 steps (v7x has two
    # TensorCores).  The kernel walks each tile in 256-lane chunks, so vreg
    # pressure is independent of TB.
    tb_req = _round_up(max(block_b, _CHUNK), _CHUNK)
    half_b = _round_up(max((B + 1) // 2, _CHUNK), _CHUNK)
    TB = min(tb_req, half_b)
    B_pad = _round_up(B, TB)

    fi = jnp.pad(feat_index, ((0, B_pad - B), (0, 0)))
    fv_t = jnp.pad(feat_value.astype(jnp.float32), ((0, B_pad - B), (0, 0))).T

    # Gather straight into the batch-on-lanes (E, F, B) layout from a
    # pre-transposed table -- no separate full-tensor transpose pass over HBM.
    emb_t = params["emb"].astype(jnp.float32).T                   # (E, feat)
    femb_t = jnp.take(emb_t, fi.T, axis=1)                        # (E, F, B_pad)
    fow_t = jnp.take(params["fo_w"].astype(jnp.float32)[:, 0], fi.T, axis=0)

    aw = params["attention_w"].astype(jnp.float32)                # (E, A)
    ab = params["attention_b"].reshape(A).astype(jnp.float32)
    ph = params["projection_h"].reshape(A).astype(jnp.float32)
    pp = params["projection_p"].reshape(E).astype(jnp.float32)
    bias = params["bias"].reshape(1).astype(jnp.float32)

    smem = pl.BlockSpec(memory_space=pltpu.MemorySpace.SMEM)
    kernel = functools.partial(_afm_kernel, chunk=_CHUNK)
    out = pl.pallas_call(
        kernel,
        grid=(B_pad // TB,),
        in_specs=[
            pl.BlockSpec((E, F, TB), lambda b: (0, 0, b)),        # femb_t
            pl.BlockSpec((F, TB), lambda b: (0, b)),              # fv_t
            pl.BlockSpec((F, TB), lambda b: (0, b)),              # fow_t
            smem, smem, smem, smem, smem,                         # aw, ab, ph, pp, bias
        ],
        out_specs=pl.BlockSpec((1, TB), lambda b: (0, b)),
        out_shape=jax.ShapeDtypeStruct((1, B_pad), jnp.float32),
        compiler_params=pltpu.CompilerParams(
            dimension_semantics=("parallel",),
            vmem_limit_bytes=32 * 1024 * 1024,
        ),
    )(femb_t, fv_t, fow_t, aw, ab, ph, pp, bias)
    return out[0, :B]


def build_cross_indices(field_size):
    row, col = [], []
    for i in range(field_size - 1):
        for j in range(i + 1, field_size):
            row.append(i)
            col.append(j)
    return jnp.array(row, jnp.int32), jnp.array(col, jnp.int32)


def afm_forward_reference(feat_index, feat_value, params):
    """Pure-JAX mirror of the PyTorch forward (for verification)."""
    F = feat_index.shape[1]
    fv = feat_value[..., None]                                    # (B,F,1)
    fow = params["fo_w"][feat_index]                              # (B,F,1)
    y_first = jnp.sum(fow * fv, axis=1)[:, 0]                     # (B,)
    femb = params["emb"][feat_index]                              # (B,F,E)
    fev = femb * fv
    row, col = build_cross_indices(F)
    p, q = fev[:, row], fev[:, col]
    bi = p * q                                                    # (B,P,E)
    att = jax.nn.relu(
        jnp.tensordot(bi, params["attention_w"], axes=([-1], [0]))
        + params["attention_b"])
    score = jnp.tensordot(att, params["projection_h"], axes=([-1], [0]))
    att_norm = jax.nn.softmax(score, axis=1)                      # (B,P,1)
    aw_sum = jnp.sum(att_norm * bi, axis=1)                       # (B,E)
    attn_out = jnp.tensordot(aw_sum, params["projection_p"], axes=([-1], [0]))[:, 0]
    y = params["bias"] + y_first + attn_out
    return jax.nn.sigmoid(y)


def _xavier_uniform(key, shape):
    limit = (6.0 / (shape[0] + shape[1])) ** 0.5
    return jax.random.uniform(key, shape, jnp.float32, -limit, limit)


def _xavier_normal(key, shape):
    std = (2.0 / (shape[0] + shape[1])) ** 0.5
    return jax.random.normal(key, shape, jnp.float32) * std


if __name__ == "__main__":
    feature_size = 64
    field_size = 8
    embedding_size = 5      # module default
    attention_size = 4      # module default
    batch = 777             # pads to 1024 -> 2 grid steps of TB=512, 2 chunks each

    key = jax.random.PRNGKey(0)
    ks = jax.random.split(key, 8)
    params = {
        "fo_w": _xavier_uniform(ks[0], (feature_size, 1)),
        "emb": _xavier_uniform(ks[1], (feature_size, embedding_size)),
        "bias": jax.random.normal(ks[2], (1,), jnp.float32),
        "attention_w": _xavier_normal(ks[3], (embedding_size, attention_size)),
        # attention_b is an uninitialized torch.Tensor in the module; use zeros.
        "attention_b": jnp.zeros((attention_size,), jnp.float32),
        "projection_h": _xavier_normal(ks[4], (attention_size, 1)),
        "projection_p": _xavier_normal(ks[5], (embedding_size, 1)),
    }

    feat_index = jax.random.randint(ks[6], (batch, field_size), 0, feature_size,
                                    dtype=jnp.int32)
    feat_value = jax.random.uniform(ks[7], (batch, field_size), jnp.float32)

    y_kernel = jax.block_until_ready(
        afm_forward_pallas(feat_index, feat_value, params))
    y_ref = jax.block_until_ready(
        afm_forward_reference(feat_index, feat_value, params))

    assert y_kernel.shape == (batch,)
    max_err = jnp.max(jnp.abs(y_kernel - y_ref))
    assert jnp.allclose(y_kernel, y_ref, rtol=2e-3, atol=2e-3), (
        max_err, y_kernel[:4], y_ref[:4])
    print("KERNEL_OK")
</pallas_src>

<mosaic_0001>
module attributes {stable_mosaic.version = 11 : i64} {
  func.func @_afm_kernel(%arg0: i32, %arg1: memref<5x8x512xf32, #tpu.memory_space<vmem>>, %arg2: memref<8x512xf32, #tpu.memory_space<vmem>>, %arg3: memref<8x512xf32, #tpu.memory_space<vmem>>, %arg4: memref<5x4xf32, #tpu.memory_space<smem>>, %arg5: memref<4xf32, #tpu.memory_space<smem>>, %arg6: memref<4xf32, #tpu.memory_space<smem>>, %arg7: memref<5xf32, #tpu.memory_space<smem>>, %arg8: memref<1xf32, #tpu.memory_space<smem>>, %arg9: memref<1x512xf32, #tpu.memory_space<vmem>>) attributes {dimension_semantics = [#tpu.dimension_semantics<parallel>], iteration_bounds = array<i64: 2>, scalar_prefetch = 0 : i64, scratch_operands = 0 : i64, tpu.core_type = #tpu.core_type<tc>, window_params = [{transform_indices = @transform_0, window_bounds = array<i64: 5, 8, 512>}, {transform_indices = @transform_1, window_bounds = array<i64: 8, 512>}, {transform_indices = @transform_2, window_bounds = array<i64: 8, 512>}, {transform_indices = @transform_3, window_bounds = array<i64: 5, 4>}, {transform_indices = @transform_4, window_bounds = array<i64: 4>}, {transform_indices = @transform_5, window_bounds = array<i64: 4>}, {transform_indices = @transform_6, window_bounds = array<i64: 5>}, {transform_indices = @transform_7, window_bounds = array<i64: 1>}, {transform_indices = @transform_8, window_bounds = array<i64: 1, 512>}]} {
    %c0 = arith.constant 0 : index
    %c0_0 = arith.constant 0 : index
    %0 = memref.load %arg4[%c0, %c0_0] : memref<5x4xf32, #tpu.memory_space<smem>>
    %c0_1 = arith.constant 0 : index
    %c1 = arith.constant 1 : index
    %1 = memref.load %arg4[%c0_1, %c1] : memref<5x4xf32, #tpu.memory_space<smem>>
    %c0_2 = arith.constant 0 : index
    %c2 = arith.constant 2 : index
    %2 = memref.load %arg4[%c0_2, %c2] : memref<5x4xf32, #tpu.memory_space<smem>>
    %c0_3 = arith.constant 0 : index
    %c3 = arith.constant 3 : index
    %3 = memref.load %arg4[%c0_3, %c3] : memref<5x4xf32, #tpu.memory_space<smem>>
    %c1_4 = arith.constant 1 : index
    %c0_5 = arith.constant 0 : index
    %4 = memref.load %arg4[%c1_4, %c0_5] : memref<5x4xf32, #tpu.memory_space<smem>>
    %c1_6 = arith.constant 1 : index
    %c1_7 = arith.constant 1 : index
    %5 = memref.load %arg4[%c1_6, %c1_7] : memref<5x4xf32, #tpu.memory_space<smem>>
    %c1_8 = arith.constant 1 : index
    %c2_9 = arith.constant 2 : index
    %6 = memref.load %arg4[%c1_8, %c2_9] : memref<5x4xf32, #tpu.memory_space<smem>>
    %c1_10 = arith.constant 1 : index
    %c3_11 = arith.constant 3 : index
    %7 = memref.load %arg4[%c1_10, %c3_11] : memref<5x4xf32, #tpu.memory_space<smem>>
    %c2_12 = arith.constant 2 : index
    %c0_13 = arith.constant 0 : index
    %8 = memref.load %arg4[%c2_12, %c0_13] : memref<5x4xf32, #tpu.memory_space<smem>>
    %c2_14 = arith.constant 2 : index
    %c1_15 = arith.constant 1 : index
    %9 = memref.load %arg4[%c2_14, %c1_15] : memref<5x4xf32, #tpu.memory_space<smem>>
    %c2_16 = arith.constant 2 : index
    %c2_17 = arith.constant 2 : index
    %10 = memref.load %arg4[%c2_16, %c2_17] : memref<5x4xf32, #tpu.memory_space<smem>>
    %c2_18 = arith.constant 2 : index
    %c3_19 = arith.constant 3 : index
    %11 = memref.load %arg4[%c2_18, %c3_19] : memref<5x4xf32, #tpu.memory_space<smem>>
    %c3_20 = arith.constant 3 : index
    %c0_21 = arith.constant 0 : index
    %12 = memref.load %arg4[%c3_20, %c0_21] : memref<5x4xf32, #tpu.memory_space<smem>>
    %c3_22 = arith.constant 3 : index
    %c1_23 = arith.constant 1 : index
    %13 = memref.load %arg4[%c3_22, %c1_23] : memref<5x4xf32, #tpu.memory_space<smem>>
    %c3_24 = arith.constant 3 : index
    %c2_25 = arith.constant 2 : index
    %14 = memref.load %arg4[%c3_24, %c2_25] : memref<5x4xf32, #tpu.memory_space<smem>>
    %c3_26 = arith.constant 3 : index
    %c3_27 = arith.constant 3 : index
    %15 = memref.load %arg4[%c3_26, %c3_27] : memref<5x4xf32, #tpu.memory_space<smem>>
    %c4 = arith.constant 4 : index
    %c0_28 = arith.constant 0 : index
    %16 = memref.load %arg4[%c4, %c0_28] : memref<5x4xf32, #tpu.memory_space<smem>>
    %c4_29 = arith.constant 4 : index
    %c1_30 = arith.constant 1 : index
    %17 = memref.load %arg4[%c4_29, %c1_30] : memref<5x4xf32, #tpu.memory_space<smem>>
    %c4_31 = arith.constant 4 : index
    %c2_32 = arith.constant 2 : index
    %18 = memref.load %arg4[%c4_31, %c2_32] : memref<5x4xf32, #tpu.memory_space<smem>>
    %c4_33 = arith.constant 4 : index
    %c3_34 = arith.constant 3 : index
    %19 = memref.load %arg4[%c4_33, %c3_34] : memref<5x4xf32, #tpu.memory_space<smem>>
    %c0_35 = arith.constant 0 : index
    %20 = memref.load %arg5[%c0_35] : memref<4xf32, #tpu.memory_space<smem>>
    %c1_36 = arith.constant 1 : index
    %21 = memref.load %arg5[%c1_36] : memref<4xf32, #tpu.memory_space<smem>>
    %c2_37 = arith.constant 2 : index
    %22 = memref.load %arg5[%c2_37] : memref<4xf32, #tpu.memory_space<smem>>
    %c3_38 = arith.constant 3 : index
    %23 = memref.load %arg5[%c3_38] : memref<4xf32, #tpu.memory_space<smem>>
    %c0_39 = arith.constant 0 : index
    %24 = memref.load %arg6[%c0_39] : memref<4xf32, #tpu.memory_space<smem>>
    %c1_40 = arith.constant 1 : index
    %25 = memref.load %arg6[%c1_40] : memref<4xf32, #tpu.memory_space<smem>>
    %c2_41 = arith.constant 2 : index
    %26 = memref.load %arg6[%c2_41] : memref<4xf32, #tpu.memory_space<smem>>
    %c3_42 = arith.constant 3 : index
    %27 = memref.load %arg6[%c3_42] : memref<4xf32, #tpu.memory_space<smem>>
    %c0_43 = arith.constant 0 : index
    %28 = memref.load %arg7[%c0_43] : memref<5xf32, #tpu.memory_space<smem>>
    %c1_44 = arith.constant 1 : index
    %29 = memref.load %arg7[%c1_44] : memref<5xf32, #tpu.memory_space<smem>>
    %c2_45 = arith.constant 2 : index
    %30 = memref.load %arg7[%c2_45] : memref<5xf32, #tpu.memory_space<smem>>
    %c3_46 = arith.constant 3 : index
    %31 = memref.load %arg7[%c3_46] : memref<5xf32, #tpu.memory_space<smem>>
    %c4_47 = arith.constant 4 : index
    %32 = memref.load %arg7[%c4_47] : memref<5xf32, #tpu.memory_space<smem>>
    %c0_48 = arith.constant 0 : index
    %33 = memref.load %arg8[%c0_48] : memref<1xf32, #tpu.memory_space<smem>>
    %c0_i32 = arith.constant 0 : i32
    %c2_i32 = arith.constant 2 : i32
    %34 = arith.addi %c0_i32, %c2_i32 : i32
    %c1_i32 = arith.constant 1 : i32
    scf.for %arg10 = %c0_i32 to %34 step %c1_i32  : i32 {
      %c256_i32 = arith.constant 256 : i32
      %35 = arith.muli %arg10, %c256_i32 : i32
      %36 = tpu.assume_multiple %35, 256 : i32
      %c0_50 = arith.constant 0 : index
      %37 = arith.index_cast %36 : i32 to index
      %38 = vector.load %arg2[%c0_50, %37] : memref<8x512xf32, #tpu.memory_space<vmem>>, vector<8x256xf32>
      %c0_51 = arith.constant 0 : index
      %39 = arith.index_cast %36 : i32 to index
      %40 = vector.load %arg3[%c0_51, %39] : memref<8x512xf32, #tpu.memory_space<vmem>>, vector<8x256xf32>
      %41 = arith.mulf %40, %38 : vector<8x256xf32>
      %cst = arith.constant dense<0.000000e+00> : vector<256xf32>
      %42 = vector.multi_reduction <add>, %41, %cst [0] : vector<8x256xf32> to vector<256xf32>
      %43 = vector.shape_cast %42 : vector<256xf32> to vector<1x256xf32>
      %c0_52 = arith.constant 0 : index
      %c0_53 = arith.constant 0 : index
      %44 = arith.index_cast %36 : i32 to index
      %45 = vector.load %arg1[%c0_52, %c0_53, %44] : memref<5x8x512xf32, #tpu.memory_space<vmem>>, vector<1x8x256xf32>
      %46 = vector.shape_cast %45 : vector<1x8x256xf32> to vector<8x256xf32>
      %47 = arith.mulf %46, %38 : vector<8x256xf32>
      %c1_54 = arith.constant 1 : index
      %c0_55 = arith.constant 0 : index
      %48 = arith.index_cast %36 : i32 to index
      %49 = vector.load %arg1[%c1_54, %c0_55, %48] : memref<5x8x512xf32, #tpu.memory_space<vmem>>, vector<1x8x256xf32>
      %50 = vector.shape_cast %49 : vector<1x8x256xf32> to vector<8x256xf32>
      %51 = arith.mulf %50, %38 : vector<8x256xf32>
      %c2_56 = arith.constant 2 : index
      %c0_57 = arith.constant 0 : index
      %52 = arith.index_cast %36 : i32 to index
      %53 = vector.load %arg1[%c2_56, %c0_57, %52] : memref<5x8x512xf32, #tpu.memory_space<vmem>>, vector<1x8x256xf32>
      %54 = vector.shape_cast %53 : vector<1x8x256xf32> to vector<8x256xf32>
      %55 = arith.mulf %54, %38 : vector<8x256xf32>
      %c3_58 = arith.constant 3 : index
      %c0_59 = arith.constant 0 : index
      %56 = arith.index_cast %36 : i32 to index
      %57 = vector.load %arg1[%c3_58, %c0_59, %56] : memref<5x8x512xf32, #tpu.memory_space<vmem>>, vector<1x8x256xf32>
      %58 = vector.shape_cast %57 : vector<1x8x256xf32> to vector<8x256xf32>
      %59 = arith.mulf %58, %38 : vector<8x256xf32>
      %c4_60 = arith.constant 4 : index
      %c0_61 = arith.constant 0 : index
      %60 = arith.index_cast %36 : i32 to index
      %61 = vector.load %arg1[%c4_60, %c0_61, %60] : memref<5x8x512xf32, #tpu.memory_space<vmem>>, vector<1x8x256xf32>
      %62 = vector.shape_cast %61 : vector<1x8x256xf32> to vector<8x256xf32>
      %63 = arith.mulf %62, %38 : vector<8x256xf32>
      %c1_i32_62 = arith.constant 1 : i32
      %64 = tpu.dynamic_rotate %47 by %c1_i32_62 dim 0 : vector<8x256xf32>, i32 -> vector<8x256xf32>
      %65 = arith.mulf %47, %64 : vector<8x256xf32>
      %c1_i32_63 = arith.constant 1 : i32
      %66 = tpu.dynamic_rotate %51 by %c1_i32_63 dim 0 : vector<8x256xf32>, i32 -> vector<8x256xf32>
      %67 = arith.mulf %51, %66 : vector<8x256xf32>
      %c1_i32_64 = arith.constant 1 : i32
      %68 = tpu.dynamic_rotate %55 by %c1_i32_64 dim 0 : vector<8x256xf32>, i32 -> vector<8x256xf32>
      %69 = arith.mulf %55, %68 : vector<8x256xf32>
      %c1_i32_65 = arith.constant 1 : i32
      %70 = tpu.dynamic_rotate %59 by %c1_i32_65 dim 0 : vector<8x256xf32>, i32 -> vector<8x256xf32>
      %71 = arith.mulf %59, %70 : vector<8x256xf32>
      %c1_i32_66 = arith.constant 1 : i32
      %72 = tpu.dynamic_rotate %63 by %c1_i32_66 dim 0 : vector<8x256xf32>, i32 -> vector<8x256xf32>
      %73 = arith.mulf %63, %72 : vector<8x256xf32>
      %74 = vector.broadcast %0 : f32 to vector<8x256xf32>
      %75 = arith.mulf %65, %74 : vector<8x256xf32>
      %76 = vector.broadcast %4 : f32 to vector<8x256xf32>
      %77 = arith.mulf %67, %76 : vector<8x256xf32>
      %78 = arith.addf %75, %77 : vector<8x256xf32>
      %79 = vector.broadcast %8 : f32 to vector<8x256xf32>
      %80 = arith.mulf %69, %79 : vector<8x256xf32>
      %81 = arith.addf %78, %80 : vector<8x256xf32>
      %82 = vector.broadcast %12 : f32 to vector<8x256xf32>
      %83 = arith.mulf %71, %82 : vector<8x256xf32>
      %84 = arith.addf %81, %83 : vector<8x256xf32>
      %85 = vector.broadcast %16 : f32 to vector<8x256xf32>
      %86 = arith.mulf %73, %85 : vector<8x256xf32>
      %87 = arith.addf %84, %86 : vector<8x256xf32>
      %88 = vector.broadcast %20 : f32 to vector<8x256xf32>
      %89 = arith.addf %87, %88 : vector<8x256xf32>
      %cst_67 = arith.constant 0.000000e+00 : f32
      %90 = vector.broadcast %cst_67 : f32 to vector<8x256xf32>
      %91 = arith.maximumf %89, %90 : vector<8x256xf32>
      %92 = vector.broadcast %24 : f32 to vector<8x256xf32>
      %93 = arith.mulf %91, %92 : vector<8x256xf32>
      %94 = vector.broadcast %1 : f32 to vector<8x256xf32>
      %95 = arith.mulf %65, %94 : vector<8x256xf32>
      %96 = vector.broadcast %5 : f32 to vector<8x256xf32>
      %97 = arith.mulf %67, %96 : vector<8x256xf32>
      %98 = arith.addf %95, %97 : vector<8x256xf32>
      %99 = vector.broadcast %9 : f32 to vector<8x256xf32>
      %100 = arith.mulf %69, %99 : vector<8x256xf32>
      %101 = arith.addf %98, %100 : vector<8x256xf32>
      %102 = vector.broadcast %13 : f32 to vector<8x256xf32>
      %103 = arith.mulf %71, %102 : vector<8x256xf32>
      %104 = arith.addf %101, %103 : vector<8x256xf32>
      %105 = vector.broadcast %17 : f32 to vector<8x256xf32>
      %106 = arith.mulf %73, %105 : vector<8x256xf32>
      %107 = arith.addf %104, %106 : vector<8x256xf32>
      %108 = vector.broadcast %21 : f32 to vector<8x256xf32>
      %109 = arith.addf %107, %108 : vector<8x256xf32>
      %cst_68 = arith.constant 0.000000e+00 : f32
      %110 = vector.broadcast %cst_68 : f32 to vector<8x256xf32>
      %111 = arith.maximumf %109, %110 : vector<8x256xf32>
      %112 = vector.broadcast %25 : f32 to vector<8x256xf32>
      %113 = arith.mulf %111, %112 : vector<8x256xf32>
      %114 = arith.addf %93, %113 : vector<8x256xf32>
      %115 = vector.broadcast %2 : f32 to vector<8x256xf32>
      %116 = arith.mulf %65, %115 : vector<8x256xf32>
      %117 = vector.broadcast %6 : f32 to vector<8x256xf32>
      %118 = arith.mulf %67, %117 : vector<8x256xf32>
      %119 = arith.addf %116, %118 : vector<8x256xf32>
      %120 = vector.broadcast %10 : f32 to vector<8x256xf32>
      %121 = arith.mulf %69, %120 : vector<8x256xf32>
      %122 = arith.addf %119, %121 : vector<8x256xf32>
      %123 = vector.broadcast %14 : f32 to vector<8x256xf32>
      %124 = arith.mulf %71, %123 : vector<8x256xf32>
      %125 = arith.addf %122, %124 : vector<8x256xf32>
      %126 = vector.broadcast %18 : f32 to vector<8x256xf32>
      %127 = arith.mulf %73, %126 : vector<8x256xf32>
      %128 = arith.addf %125, %127 : vector<8x256xf32>
      %129 = vector.broadcast %22 : f32 to vector<8x256xf32>
      %130 = arith.addf %128, %129 : vector<8x256xf32>
      %cst_69 = arith.constant 0.000000e+00 : f32
      %131 = vector.broadcast %cst_69 : f32 to vector<8x256xf32>
      %132 = arith.maximumf %130, %131 : vector<8x256xf32>
      %133 = vector.broadcast %26 : f32 to vector<8x256xf32>
      %134 = arith.mulf %132, %133 : vector<8x256xf32>
      %135 = arith.addf %114, %134 : vector<8x256xf32>
      %136 = vector.broadcast %3 : f32 to vector<8x256xf32>
      %137 = arith.mulf %65, %136 : vector<8x256xf32>
      %138 = vector.broadcast %7 : f32 to vector<8x256xf32>
      %139 = arith.mulf %67, %138 : vector<8x256xf32>
      %140 = arith.addf %137, %139 : vector<8x256xf32>
      %141 = vector.broadcast %11 : f32 to vector<8x256xf32>
      %142 = arith.mulf %69, %141 : vector<8x256xf32>
      %143 = arith.addf %140, %142 : vector<8x256xf32>
      %144 = vector.broadcast %15 : f32 to vector<8x256xf32>
      %145 = arith.mulf %71, %144 : vector<8x256xf32>
      %146 = arith.addf %143, %145 : vector<8x256xf32>
      %147 = vector.broadcast %19 : f32 to vector<8x256xf32>
      %148 = arith.mulf %73, %147 : vector<8x256xf32>
      %149 = arith.addf %146, %148 : vector<8x256xf32>
      %150 = vector.broadcast %23 : f32 to vector<8x256xf32>
      %151 = arith.addf %149, %150 : vector<8x256xf32>
      %cst_70 = arith.constant 0.000000e+00 : f32
      %152 = vector.broadcast %cst_70 : f32 to vector<8x256xf32>
      %153 = arith.maximumf %151, %152 : vector<8x256xf32>
      %154 = vector.broadcast %27 : f32 to vector<8x256xf32>
      %155 = arith.mulf %153, %154 : vector<8x256xf32>
      %156 = arith.addf %135, %155 : vector<8x256xf32>
      %157 = vector.broadcast %28 : f32 to vector<8x256xf32>
      %158 = arith.mulf %65, %157 : vector<8x256xf32>
      %159 = vector.broadcast %29 : f32 to vector<8x256xf32>
      %160 = arith.mulf %67, %159 : vector<8x256xf32>
      %161 = arith.addf %158, %160 : vector<8x256xf32>
      %162 = vector.broadcast %30 : f32 to vector<8x256xf32>
      %163 = arith.mulf %69, %162 : vector<8x256xf32>
      %164 = arith.addf %161, %163 : vector<8x256xf32>
      %165 = vector.broadcast %31 : f32 to vector<8x256xf32>
      %166 = arith.mulf %71, %165 : vector<8x256xf32>
      %167 = arith.addf %164, %166 : vector<8x256xf32>
      %168 = vector.broadcast %32 : f32 to vector<8x256xf32>
      %169 = arith.mulf %73, %168 : vector<8x256xf32>
      %170 = arith.addf %167, %169 : vector<8x256xf32>
      %cst_71 = arith.constant dense<0xFF800000> : vector<256xf32>
      %171 = vector.multi_reduction <maximumf>, %156, %cst_71 [0] : vector<8x256xf32> to vector<256xf32>
      %172 = vector.shape_cast %171 : vector<256xf32> to vector<1x256xf32>
      %173 = vector.broadcast %172 : vector<1x256xf32> to vector<8x256xf32>
      %174 = arith.subf %156, %173 : vector<8x256xf32>
      %175 = math.exp %174 : vector<8x256xf32>
      %cst_72 = arith.constant dense<0.000000e+00> : vector<256xf32>
      %176 = vector.multi_reduction <add>, %175, %cst_72 [0] : vector<8x256xf32> to vector<256xf32>
      %177 = vector.shape_cast %176 : vector<256xf32> to vector<1x256xf32>
      %178 = arith.mulf %175, %170 : vector<8x256xf32>
      %cst_73 = arith.constant dense<0.000000e+00> : vector<256xf32>
      %179 = vector.multi_reduction <add>, %178, %cst_73 [0] : vector<8x256xf32> to vector<256xf32>
      %180 = vector.shape_cast %179 : vector<256xf32> to vector<1x256xf32>
      %c2_i32_74 = arith.constant 2 : i32
      %181 = tpu.dynamic_rotate %47 by %c2_i32_74 dim 0 : vector<8x256xf32>, i32 -> vector<8x256xf32>
      %182 = arith.mulf %47, %181 : vector<8x256xf32>
      %c2_i32_75 = arith.constant 2 : i32
      %183 = tpu.dynamic_rotate %51 by %c2_i32_75 dim 0 : vector<8x256xf32>, i32 -> vector<8x256xf32>
      %184 = arith.mulf %51, %183 : vector<8x256xf32>
      %c2_i32_76 = arith.constant 2 : i32
      %185 = tpu.dynamic_rotate %55 by %c2_i32_76 dim 0 : vector<8x256xf32>, i32 -> vector<8x256xf32>
      %186 = arith.mulf %55, %185 : vector<8x256xf32>
      %c2_i32_77 = arith.constant 2 : i32
      %187 = tpu.dynamic_rotate %59 by %c2_i32_77 dim 0 : vector<8x256xf32>, i32 -> vector<8x256xf32>
      %188 = arith.mulf %59, %187 : vector<8x256xf32>
      %c2_i32_78 = arith.constant 2 : i32
      %189 = tpu.dynamic_rotate %63 by %c2_i32_78 dim 0 : vector<8x256xf32>, i32 -> vector<8x256xf32>
      %190 = arith.mulf %63, %189 : vector<8x256xf32>
      %191 = vector.broadcast %0 : f32 to vector<8x256xf32>
      %192 = arith.mulf %182, %191 : vector<8x256xf32>
      %193 = vector.broadcast %4 : f32 to vector<8x256xf32>
      %194 = arith.mulf %184, %193 : vector<8x256xf32>
      %195 = arith.addf %192, %194 : vector<8x256xf32>
      %196 = vector.broadcast %8 : f32 to vector<8x256xf32>
      %197 = arith.mulf %186, %196 : vector<8x256xf32>
      %198 = arith.addf %195, %197 : vector<8x256xf32>
      %199 = vector.broadcast %12 : f32 to vector<8x256xf32>
      %200 = arith.mulf %188, %199 : vector<8x256xf32>
      %201 = arith.addf %198, %200 : vector<8x256xf32>
      %202 = vector.broadcast %16 : f32 to vector<8x256xf32>
      %203 = arith.mulf %190, %202 : vector<8x256xf32>
      %204 = arith.addf %201, %203 : vector<8x256xf32>
      %205 = vector.broadcast %20 : f32 to vector<8x256xf32>
      %206 = arith.addf %204, %205 : vector<8x256xf32>
      %cst_79 = arith.constant 0.000000e+00 : f32
      %207 = vector.broadcast %cst_79 : f32 to vector<8x256xf32>
      %208 = arith.maximumf %206, %207 : vector<8x256xf32>
      %209 = vector.broadcast %24 : f32 to vector<8x256xf32>
      %210 = arith.mulf %208, %209 : vector<8x256xf32>
      %211 = vector.broadcast %1 : f32 to vector<8x256xf32>
      %212 = arith.mulf %182, %211 : vector<8x256xf32>
      %213 = vector.broadcast %5 : f32 to vector<8x256xf32>
      %214 = arith.mulf %184, %213 : vector<8x256xf32>
      %215 = arith.addf %212, %214 : vector<8x256xf32>
      %216 = vector.broadcast %9 : f32 to vector<8x256xf32>
      %217 = arith.mulf %186, %216 : vector<8x256xf32>
      %218 = arith.addf %215, %217 : vector<8x256xf32>
      %219 = vector.broadcast %13 : f32 to vector<8x256xf32>
      %220 = arith.mulf %188, %219 : vector<8x256xf32>
      %221 = arith.addf %218, %220 : vector<8x256xf32>
      %222 = vector.broadcast %17 : f32 to vector<8x256xf32>
      %223 = arith.mulf %190, %222 : vector<8x256xf32>
      %224 = arith.addf %221, %223 : vector<8x256xf32>
      %225 = vector.broadcast %21 : f32 to vector<8x256xf32>
      %226 = arith.addf %224, %225 : vector<8x256xf32>
      %cst_80 = arith.constant 0.000000e+00 : f32
      %227 = vector.broadcast %cst_80 : f32 to vector<8x256xf32>
      %228 = arith.maximumf %226, %227 : vector<8x256xf32>
      %229 = vector.broadcast %25 : f32 to vector<8x256xf32>
      %230 = arith.mulf %228, %229 : vector<8x256xf32>
      %231 = arith.addf %210, %230 : vector<8x256xf32>
      %232 = vector.broadcast %2 : f32 to vector<8x256xf32>
      %233 = arith.mulf %182, %232 : vector<8x256xf32>
      %234 = vector.broadcast %6 : f32 to vector<8x256xf32>
      %235 = arith.mulf %184, %234 : vector<8x256xf32>
      %236 = arith.addf %233, %235 : vector<8x256xf32>
      %237 = vector.broadcast %10 : f32 to vector<8x256xf32>
      %238 = arith.mulf %186, %237 : vector<8x256xf32>
      %239 = arith.addf %236, %238 : vector<8x256xf32>
      %240 = vector.broadcast %14 : f32 to vector<8x256xf32>
      %241 = arith.mulf %188, %240 : vector<8x256xf32>
      %242 = arith.addf %239, %241 : vector<8x256xf32>
      %243 = vector.broadcast %18 : f32 to vector<8x256xf32>
      %244 = arith.mulf %190, %243 : vector<8x256xf32>
      %245 = arith.addf %242, %244 : vector<8x256xf32>
      %246 = vector.broadcast %22 : f32 to vector<8x256xf32>
      %247 = arith.addf %245, %246 : vector<8x256xf32>
      %cst_81 = arith.constant 0.000000e+00 : f32
      %248 = vector.broadcast %cst_81 : f32 to vector<8x256xf32>
      %249 = arith.maximumf %247, %248 : vector<8x256xf32>
      %250 = vector.broadcast %26 : f32 to vector<8x256xf32>
      %251 = arith.mulf %249, %250 : vector<8x256xf32>
      %252 = arith.addf %231, %251 : vector<8x256xf32>
      %253 = vector.broadcast %3 : f32 to vector<8x256xf32>
      %254 = arith.mulf %182, %253 : vector<8x256xf32>
      %255 = vector.broadcast %7 : f32 to vector<8x256xf32>
      %256 = arith.mulf %184, %255 : vector<8x256xf32>
      %257 = arith.addf %254, %256 : vector<8x256xf32>
      %258 = vector.broadcast %11 : f32 to vector<8x256xf32>
      %259 = arith.mulf %186, %258 : vector<8x256xf32>
      %260 = arith.addf %257, %259 : vector<8x256xf32>
      %261 = vector.broadcast %15 : f32 to vector<8x256xf32>
      %262 = arith.mulf %188, %261 : vector<8x256xf32>
      %263 = arith.addf %260, %262 : vector<8x256xf32>
      %264 = vector.broadcast %19 : f32 to vector<8x256xf32>
      %265 = arith.mulf %190, %264 : vector<8x256xf32>
      %266 = arith.addf %263, %265 : vector<8x256xf32>
      %267 = vector.broadcast %23 : f32 to vector<8x256xf32>
      %268 = arith.addf %266, %267 : vector<8x256xf32>
      %cst_82 = arith.constant 0.000000e+00 : f32
      %269 = vector.broadcast %cst_82 : f32 to vector<8x256xf32>
      %270 = arith.maximumf %268, %269 : vector<8x256xf32>
      %271 = vector.broadcast %27 : f32 to vector<8x256xf32>
      %272 = arith.mulf %270, %271 : vector<8x256xf32>
      %273 = arith.addf %252, %272 : vector<8x256xf32>
      %274 = vector.broadcast %28 : f32 to vector<8x256xf32>
      %275 = arith.mulf %182, %274 : vector<8x256xf32>
      %276 = vector.broadcast %29 : f32 to vector<8x256xf32>
      %277 = arith.mulf %184, %276 : vector<8x256xf32>
      %278 = arith.addf %275, %277 : vector<8x256xf32>
      %279 = vector.broadcast %30 : f32 to vector<8x256xf32>
      %280 = arith.mulf %186, %279 : vector<8x256xf32>
      %281 = arith.addf %278, %280 : vector<8x256xf32>
      %282 = vector.broadcast %31 : f32 to vector<8x256xf32>
      %283 = arith.mulf %188, %282 : vector<8x256xf32>
      %284 = arith.addf %281, %283 : vector<8x256xf32>
      %285 = vector.broadcast %32 : f32 to vector<8x256xf32>
      %286 = arith.mulf %190, %285 : vector<8x256xf32>
      %287 = arith.addf %284, %286 : vector<8x256xf32>
      %cst_83 = arith.constant dense<0xFF800000> : vector<256xf32>
      %288 = vector.multi_reduction <maximumf>, %273, %cst_83 [0] : vector<8x256xf32> to vector<256xf32>
      %289 = vector.shape_cast %288 : vector<256xf32> to vector<1x256xf32>
      %290 = arith.maximumf %172, %289 : vector<1x256xf32>
      %291 = arith.subf %172, %290 : vector<1x256xf32>
      %292 = math.exp %291 : vector<1x256xf32>
      %293 = vector.broadcast %290 : vector<1x256xf32> to vector<8x256xf32>
      %294 = arith.subf %273, %293 : vector<8x256xf32>
      %295 = math.exp %294 : vector<8x256xf32>
      %296 = arith.mulf %292, %177 : vector<1x256xf32>
      %cst_84 = arith.constant dense<0.000000e+00> : vector<256xf32>
      %297 = vector.multi_reduction <add>, %295, %cst_84 [0] : vector<8x256xf32> to vector<256xf32>
      %298 = vector.shape_cast %297 : vector<256xf32> to vector<1x256xf32>
      %299 = arith.addf %296, %298 : vector<1x256xf32>
      %300 = arith.mulf %292, %180 : vector<1x256xf32>
      %301 = arith.mulf %295, %287 : vector<8x256xf32>
      %cst_85 = arith.constant dense<0.000000e+00> : vector<256xf32>
      %302 = vector.multi_reduction <add>, %301, %cst_85 [0] : vector<8x256xf32> to vector<256xf32>
      %303 = vector.shape_cast %302 : vector<256xf32> to vector<1x256xf32>
      %304 = arith.addf %300, %303 : vector<1x256xf32>
      %c3_i32 = arith.constant 3 : i32
      %305 = tpu.dynamic_rotate %47 by %c3_i32 dim 0 : vector<8x256xf32>, i32 -> vector<8x256xf32>
      %306 = arith.mulf %47, %305 : vector<8x256xf32>
      %c3_i32_86 = arith.constant 3 : i32
      %307 = tpu.dynamic_rotate %51 by %c3_i32_86 dim 0 : vector<8x256xf32>, i32 -> vector<8x256xf32>
      %308 = arith.mulf %51, %307 : vector<8x256xf32>
      %c3_i32_87 = arith.constant 3 : i32
      %309 = tpu.dynamic_rotate %55 by %c3_i32_87 dim 0 : vector<8x256xf32>, i32 -> vector<8x256xf32>
      %310 = arith.mulf %55, %309 : vector<8x256xf32>
      %c3_i32_88 = arith.constant 3 : i32
      %311 = tpu.dynamic_rotate %59 by %c3_i32_88 dim 0 : vector<8x256xf32>, i32 -> vector<8x256xf32>
      %312 = arith.mulf %59, %311 : vector<8x256xf32>
      %c3_i32_89 = arith.constant 3 : i32
      %313 = tpu.dynamic_rotate %63 by %c3_i32_89 dim 0 : vector<8x256xf32>, i32 -> vector<8x256xf32>
      %314 = arith.mulf %63, %313 : vector<8x256xf32>
      %315 = vector.broadcast %0 : f32 to vector<8x256xf32>
      %316 = arith.mulf %306, %315 : vector<8x256xf32>
      %317 = vector.broadcast %4 : f32 to vector<8x256xf32>
      %318 = arith.mulf %308, %317 : vector<8x256xf32>
      %319 = arith.addf %316, %318 : vector<8x256xf32>
      %320 = vector.broadcast %8 : f32 to vector<8x256xf32>
      %321 = arith.mulf %310, %320 : vector<8x256xf32>
      %322 = arith.addf %319, %321 : vector<8x256xf32>
      %323 = vector.broadcast %12 : f32 to vector<8x256xf32>
      %324 = arith.mulf %312, %323 : vector<8x256xf32>
      %325 = arith.addf %322, %324 : vector<8x256xf32>
      %326 = vector.broadcast %16 : f32 to vector<8x256xf32>
      %327 = arith.mulf %314, %326 : vector<8x256xf32>
      %328 = arith.addf %325, %327 : vector<8x256xf32>
      %329 = vector.broadcast %20 : f32 to vector<8x256xf32>
      %330 = arith.addf %328, %329 : vector<8x256xf32>
      %cst_90 = arith.constant 0.000000e+00 : f32
      %331 = vector.broadcast %cst_90 : f32 to vector<8x256xf32>
      %332 = arith.maximumf %330, %331 : vector<8x256xf32>
      %333 = vector.broadcast %24 : f32 to vector<8x256xf32>
      %334 = arith.mulf %332, %333 : vector<8x256xf32>
      %335 = vector.broadcast %1 : f32 to vector<8x256xf32>
      %336 = arith.mulf %306, %335 : vector<8x256xf32>
      %337 = vector.broadcast %5 : f32 to vector<8x256xf32>
      %338 = arith.mulf %308, %337 : vector<8x256xf32>
      %339 = arith.addf %336, %338 : vector<8x256xf32>
      %340 = vector.broadcast %9 : f32 to vector<8x256xf32>
      %341 = arith.mulf %310, %340 : vector<8x256xf32>
      %342 = arith.addf %339, %341 : vector<8x256xf32>
      %343 = vector.broadcast %13 : f32 to vector<8x256xf32>
      %344 = arith.mulf %312, %343 : vector<8x256xf32>
      %345 = arith.addf %342, %344 : vector<8x256xf32>
      %346 = vector.broadcast %17 : f32 to vector<8x256xf32>
      %347 = arith.mulf %314, %346 : vector<8x256xf32>
      %348 = arith.addf %345, %347 : vector<8x256xf32>
      %349 = vector.broadcast %21 : f32 to vector<8x256xf32>
      %350 = arith.addf %348, %349 : vector<8x256xf32>
      %cst_91 = arith.constant 0.000000e+00 : f32
      %351 = vector.broadcast %cst_91 : f32 to vector<8x256xf32>
      %352 = arith.maximumf %350, %351 : vector<8x256xf32>
      %353 = vector.broadcast %25 : f32 to vector<8x256xf32>
      %354 = arith.mulf %352, %353 : vector<8x256xf32>
      %355 = arith.addf %334, %354 : vector<8x256xf32>
      %356 = vector.broadcast %2 : f32 to vector<8x256xf32>
      %357 = arith.mulf %306, %356 : vector<8x256xf32>
      %358 = vector.broadcast %6 : f32 to vector<8x256xf32>
      %359 = arith.mulf %308, %358 : vector<8x256xf32>
      %360 = arith.addf %357, %359 : vector<8x256xf32>
      %361 = vector.broadcast %10 : f32 to vector<8x256xf32>
      %362 = arith.mulf %310, %361 : vector<8x256xf32>
      %363 = arith.addf %360, %362 : vector<8x256xf32>
      %364 = vector.broadcast %14 : f32 to vector<8x256xf32>
      %365 = arith.mulf %312, %364 : vector<8x256xf32>
      %366 = arith.addf %363, %365 : vector<8x256xf32>
      %367 = vector.broadcast %18 : f32 to vector<8x256xf32>
      %368 = arith.mulf %314, %367 : vector<8x256xf32>
      %369 = arith.addf %366, %368 : vector<8x256xf32>
      %370 = vector.broadcast %22 : f32 to vector<8x256xf32>
      %371 = arith.addf %369, %370 : vector<8x256xf32>
      %cst_92 = arith.constant 0.000000e+00 : f32
      %372 = vector.broadcast %cst_92 : f32 to vector<8x256xf32>
      %373 = arith.maximumf %371, %372 : vector<8x256xf32>
      %374 = vector.broadcast %26 : f32 to vector<8x256xf32>
      %375 = arith.mulf %373, %374 : vector<8x256xf32>
      %376 = arith.addf %355, %375 : vector<8x256xf32>
      %377 = vector.broadcast %3 : f32 to vector<8x256xf32>
      %378 = arith.mulf %306, %377 : vector<8x256xf32>
      %379 = vector.broadcast %7 : f32 to vector<8x256xf32>
      %380 = arith.mulf %308, %379 : vector<8x256xf32>
      %381 = arith.addf %378, %380 : vector<8x256xf32>
      %382 = vector.broadcast %11 : f32 to vector<8x256xf32>
      %383 = arith.mulf %310, %382 : vector<8x256xf32>
      %384 = arith.addf %381, %383 : vector<8x256xf32>
      %385 = vector.broadcast %15 : f32 to vector<8x256xf32>
      %386 = arith.mulf %312, %385 : vector<8x256xf32>
      %387 = arith.addf %384, %386 : vector<8x256xf32>
      %388 = vector.broadcast %19 : f32 to vector<8x256xf32>
      %389 = arith.mulf %314, %388 : vector<8x256xf32>
      %390 = arith.addf %387, %389 : vector<8x256xf32>
      %391 = vector.broadcast %23 : f32 to vector<8x256xf32>
      %392 = arith.addf %390, %391 : vector<8x256xf32>
      %cst_93 = arith.constant 0.000000e+00 : f32
      %393 = vector.broadcast %cst_93 : f32 to vector<8x256xf32>
      %394 = arith.maximumf %392, %393 : vector<8x256xf32>
      %395 = vector.broadcast %27 : f32 to vector<8x256xf32>
      %396 = arith.mulf %394, %395 : vector<8x256xf32>
      %397 = arith.addf %376, %396 : vector<8x256xf32>
      %398 = vector.broadcast %28 : f32 to vector<8x256xf32>
      %399 = arith.mulf %306, %398 : vector<8x256xf32>
      %400 = vector.broadcast %29 : f32 to vector<8x256xf32>
      %401 = arith.mulf %308, %400 : vector<8x256xf32>
      %402 = arith.addf %399, %401 : vector<8x256xf32>
      %403 = vector.broadcast %30 : f32 to vector<8x256xf32>
      %404 = arith.mulf %310, %403 : vector<8x256xf32>
      %405 = arith.addf %402, %404 : vector<8x256xf32>
      %406 = vector.broadcast %31 : f32 to vector<8x256xf32>
      %407 = arith.mulf %312, %406 : vector<8x256xf32>
      %408 = arith.addf %405, %407 : vector<8x256xf32>
      %409 = vector.broadcast %32 : f32 to vector<8x256xf32>
      %410 = arith.mulf %314, %409 : vector<8x256xf32>
      %411 = arith.addf %408, %410 : vector<8x256xf32>
      %cst_94 = arith.constant dense<0xFF800000> : vector<256xf32>
      %412 = vector.multi_reduction <maximumf>, %397, %cst_94 [0] : vector<8x256xf32> to vector<256xf32>
      %413 = vector.shape_cast %412 : vector<256xf32> to vector<1x256xf32>
      %414 = arith.maximumf %290, %413 : vector<1x256xf32>
      %415 = arith.subf %290, %414 : vector<1x256xf32>
      %416 = math.exp %415 : vector<1x256xf32>
      %417 = vector.broadcast %414 : vector<1x256xf32> to vector<8x256xf32>
      %418 = arith.subf %397, %417 : vector<8x256xf32>
      %419 = math.exp %418 : vector<8x256xf32>
      %420 = arith.mulf %416, %299 : vector<1x256xf32>
      %cst_95 = arith.constant dense<0.000000e+00> : vector<256xf32>
      %421 = vector.multi_reduction <add>, %419, %cst_95 [0] : vector<8x256xf32> to vector<256xf32>
      %422 = vector.shape_cast %421 : vector<256xf32> to vector<1x256xf32>
      %423 = arith.addf %420, %422 : vector<1x256xf32>
      %424 = arith.mulf %416, %304 : vector<1x256xf32>
      %425 = arith.mulf %419, %411 : vector<8x256xf32>
      %cst_96 = arith.constant dense<0.000000e+00> : vector<256xf32>
      %426 = vector.multi_reduction <add>, %425, %cst_96 [0] : vector<8x256xf32> to vector<256xf32>
      %427 = vector.shape_cast %426 : vector<256xf32> to vector<1x256xf32>
      %428 = arith.addf %424, %427 : vector<1x256xf32>
      %c4_i32 = arith.constant 4 : i32
      %429 = tpu.dynamic_rotate %47 by %c4_i32 dim 0 : vector<8x256xf32>, i32 -> vector<8x256xf32>
      %430 = arith.mulf %47, %429 : vector<8x256xf32>
      %c4_i32_97 = arith.constant 4 : i32
      %431 = tpu.dynamic_rotate %51 by %c4_i32_97 dim 0 : vector<8x256xf32>, i32 -> vector<8x256xf32>
      %432 = arith.mulf %51, %431 : vector<8x256xf32>
      %c4_i32_98 = arith.constant 4 : i32
      %433 = tpu.dynamic_rotate %55 by %c4_i32_98 dim 0 : vector<8x256xf32>, i32 -> vector<8x256xf32>
      %434 = arith.mulf %55, %433 : vector<8x256xf32>
      %c4_i32_99 = arith.constant 4 : i32
      %435 = tpu.dynamic_rotate %59 by %c4_i32_99 dim 0 : vector<8x256xf32>, i32 -> vector<8x256xf32>
      %436 = arith.mulf %59, %435 : vector<8x256xf32>
      %c4_i32_100 = arith.constant 4 : i32
      %437 = tpu.dynamic_rotate %63 by %c4_i32_100 dim 0 : vector<8x256xf32>, i32 -> vector<8x256xf32>
      %438 = arith.mulf %63, %437 : vector<8x256xf32>
      %439 = vector.broadcast %0 : f32 to vector<8x256xf32>
      %440 = arith.mulf %430, %439 : vector<8x256xf32>
      %441 = vector.broadcast %4 : f32 to vector<8x256xf32>
      %442 = arith.mulf %432, %441 : vector<8x256xf32>
      %443 = arith.addf %440, %442 : vector<8x256xf32>
      %444 = vector.broadcast %8 : f32 to vector<8x256xf32>
      %445 = arith.mulf %434, %444 : vector<8x256xf32>
      %446 = arith.addf %443, %445 : vector<8x256xf32>
      %447 = vector.broadcast %12 : f32 to vector<8x256xf32>
      %448 = arith.mulf %436, %447 : vector<8x256xf32>
      %449 = arith.addf %446, %448 : vector<8x256xf32>
      %450 = vector.broadcast %16 : f32 to vector<8x256xf32>
      %451 = arith.mulf %438, %450 : vector<8x256xf32>
      %452 = arith.addf %449, %451 : vector<8x256xf32>
      %453 = vector.broadcast %20 : f32 to vector<8x256xf32>
      %454 = arith.addf %452, %453 : vector<8x256xf32>
      %cst_101 = arith.constant 0.000000e+00 : f32
      %455 = vector.broadcast %cst_101 : f32 to vector<8x256xf32>
      %456 = arith.maximumf %454, %455 : vector<8x256xf32>
      %457 = vector.broadcast %24 : f32 to vector<8x256xf32>
      %458 = arith.mulf %456, %457 : vector<8x256xf32>
      %459 = vector.broadcast %1 : f32 to vector<8x256xf32>
      %460 = arith.mulf %430, %459 : vector<8x256xf32>
      %461 = vector.broadcast %5 : f32 to vector<8x256xf32>
      %462 = arith.mulf %432, %461 : vector<8x256xf32>
      %463 = arith.addf %460, %462 : vector<8x256xf32>
      %464 = vector.broadcast %9 : f32 to vector<8x256xf32>
      %465 = arith.mulf %434, %464 : vector<8x256xf32>
      %466 = arith.addf %463, %465 : vector<8x256xf32>
      %467 = vector.broadcast %13 : f32 to vector<8x256xf32>
      %468 = arith.mulf %436, %467 : vector<8x256xf32>
      %469 = arith.addf %466, %468 : vector<8x256xf32>
      %470 = vector.broadcast %17 : f32 to vector<8x256xf32>
      %471 = arith.mulf %438, %470 : vector<8x256xf32>
      %472 = arith.addf %469, %471 : vector<8x256xf32>
      %473 = vector.broadcast %21 : f32 to vector<8x256xf32>
      %474 = arith.addf %472, %473 : vector<8x256xf32>
      %cst_102 = arith.constant 0.000000e+00 : f32
      %475 = vector.broadcast %cst_102 : f32 to vector<8x256xf32>
      %476 = arith.maximumf %474, %475 : vector<8x256xf32>
      %477 = vector.broadcast %25 : f32 to vector<8x256xf32>
      %478 = arith.mulf %476, %477 : vector<8x256xf32>
      %479 = arith.addf %458, %478 : vector<8x256xf32>
      %480 = vector.broadcast %2 : f32 to vector<8x256xf32>
      %481 = arith.mulf %430, %480 : vector<8x256xf32>
      %482 = vector.broadcast %6 : f32 to vector<8x256xf32>
      %483 = arith.mulf %432, %482 : vector<8x256xf32>
      %484 = arith.addf %481, %483 : vector<8x256xf32>
      %485 = vector.broadcast %10 : f32 to vector<8x256xf32>
      %486 = arith.mulf %434, %485 : vector<8x256xf32>
      %487 = arith.addf %484, %486 : vector<8x256xf32>
      %488 = vector.broadcast %14 : f32 to vector<8x256xf32>
      %489 = arith.mulf %436, %488 : vector<8x256xf32>
      %490 = arith.addf %487, %489 : vector<8x256xf32>
      %491 = vector.broadcast %18 : f32 to vector<8x256xf32>
      %492 = arith.mulf %438, %491 : vector<8x256xf32>
      %493 = arith.addf %490, %492 : vector<8x256xf32>
      %494 = vector.broadcast %22 : f32 to vector<8x256xf32>
      %495 = arith.addf %493, %494 : vector<8x256xf32>
      %cst_103 = arith.constant 0.000000e+00 : f32
      %496 = vector.broadcast %cst_103 : f32 to vector<8x256xf32>
      %497 = arith.maximumf %495, %496 : vector<8x256xf32>
      %498 = vector.broadcast %26 : f32 to vector<8x256xf32>
      %499 = arith.mulf %497, %498 : vector<8x256xf32>
      %500 = arith.addf %479, %499 : vector<8x256xf32>
      %501 = vector.broadcast %3 : f32 to vector<8x256xf32>
      %502 = arith.mulf %430, %501 : vector<8x256xf32>
      %503 = vector.broadcast %7 : f32 to vector<8x256xf32>
      %504 = arith.mulf %432, %503 : vector<8x256xf32>
      %505 = arith.addf %502, %504 : vector<8x256xf32>
      %506 = vector.broadcast %11 : f32 to vector<8x256xf32>
      %507 = arith.mulf %434, %506 : vector<8x256xf32>
      %508 = arith.addf %505, %507 : vector<8x256xf32>
      %509 = vector.broadcast %15 : f32 to vector<8x256xf32>
      %510 = arith.mulf %436, %509 : vector<8x256xf32>
      %511 = arith.addf %508, %510 : vector<8x256xf32>
      %512 = vector.broadcast %19 : f32 to vector<8x256xf32>
      %513 = arith.mulf %438, %512 : vector<8x256xf32>
      %514 = arith.addf %511, %513 : vector<8x256xf32>
      %515 = vector.broadcast %23 : f32 to vector<8x256xf32>
      %516 = arith.addf %514, %515 : vector<8x256xf32>
      %cst_104 = arith.constant 0.000000e+00 : f32
      %517 = vector.broadcast %cst_104 : f32 to vector<8x256xf32>
      %518 = arith.maximumf %516, %517 : vector<8x256xf32>
      %519 = vector.broadcast %27 : f32 to vector<8x256xf32>
      %520 = arith.mulf %518, %519 : vector<8x256xf32>
      %521 = arith.addf %500, %520 : vector<8x256xf32>
      %522 = vector.broadcast %28 : f32 to vector<8x256xf32>
      %523 = arith.mulf %430, %522 : vector<8x256xf32>
      %524 = vector.broadcast %29 : f32 to vector<8x256xf32>
      %525 = arith.mulf %432, %524 : vector<8x256xf32>
      %526 = arith.addf %523, %525 : vector<8x256xf32>
      %527 = vector.broadcast %30 : f32 to vector<8x256xf32>
      %528 = arith.mulf %434, %527 : vector<8x256xf32>
      %529 = arith.addf %526, %528 : vector<8x256xf32>
      %530 = vector.broadcast %31 : f32 to vector<8x256xf32>
      %531 = arith.mulf %436, %530 : vector<8x256xf32>
      %532 = arith.addf %529, %531 : vector<8x256xf32>
      %533 = vector.broadcast %32 : f32 to vector<8x256xf32>
      %534 = arith.mulf %438, %533 : vector<8x256xf32>
      %535 = arith.addf %532, %534 : vector<8x256xf32>
      %cst_105 = arith.constant dense<0xFF800000> : vector<256xf32>
      %536 = vector.multi_reduction <maximumf>, %521, %cst_105 [0] : vector<8x256xf32> to vector<256xf32>
      %537 = vector.shape_cast %536 : vector<256xf32> to vector<1x256xf32>
      %538 = arith.maximumf %414, %537 : vector<1x256xf32>
      %539 = arith.subf %414, %538 : vector<1x256xf32>
      %540 = math.exp %539 : vector<1x256xf32>
      %541 = vector.broadcast %538 : vector<1x256xf32> to vector<8x256xf32>
      %542 = arith.subf %521, %541 : vector<8x256xf32>
      %543 = math.exp %542 : vector<8x256xf32>
      %cst_106 = arith.constant 5.000000e-01 : f32
      %544 = vector.broadcast %cst_106 : f32 to vector<8x256xf32>
      %545 = arith.mulf %543, %544 : vector<8x256xf32>
      %546 = arith.mulf %540, %423 : vector<1x256xf32>
      %cst_107 = arith.constant dense<0.000000e+00> : vector<256xf32>
      %547 = vector.multi_reduction <add>, %545, %cst_107 [0] : vector<8x256xf32> to vector<256xf32>
      %548 = vector.shape_cast %547 : vector<256xf32> to vector<1x256xf32>
      %549 = arith.addf %546, %548 : vector<1x256xf32>
      %550 = arith.mulf %540, %428 : vector<1x256xf32>
      %551 = arith.mulf %545, %535 : vector<8x256xf32>
      %cst_108 = arith.constant dense<0.000000e+00> : vector<256xf32>
      %552 = vector.multi_reduction <add>, %551, %cst_108 [0] : vector<8x256xf32> to vector<256xf32>
      %553 = vector.shape_cast %552 : vector<256xf32> to vector<1x256xf32>
      %554 = arith.addf %550, %553 : vector<1x256xf32>
      %555 = arith.divf %554, %549 : vector<1x256xf32>
      %556 = vector.broadcast %33 : f32 to vector<1x256xf32>
      %557 = arith.addf %556, %43 : vector<1x256xf32>
      %558 = arith.addf %557, %555 : vector<1x256xf32>
      %cst_109 = arith.constant 0.000000e+00 : f32
      %559 = vector.broadcast %cst_109 : f32 to vector<1x256xf32>
      %560 = arith.subf %559, %558 : vector<1x256xf32>
      %561 = math.exp %560 : vector<1x256xf32>
      %cst_110 = arith.constant 1.000000e+00 : f32
      %562 = vector.broadcast %cst_110 : f32 to vector<1x256xf32>
      %563 = arith.addf %562, %561 : vector<1x256xf32>
      %cst_111 = arith.constant 1.000000e+00 : f32
      %564 = vector.broadcast %cst_111 : f32 to vector<1x256xf32>
      %565 = arith.divf %564, %563 : vector<1x256xf32>
      %c0_112 = arith.constant 0 : index
      %566 = arith.index_cast %36 : i32 to index
      %567 = vector.load %arg9[%c0_112, %566] : memref<1x512xf32, #tpu.memory_space<vmem>>, vector<1x256xf32>
      tpu.vector_store %arg9[%c0_112, %566], %565 {strides = array<i32>} : memref<1x512xf32, #tpu.memory_space<vmem>>, vector<1x256xf32>,
    }
    %c2_i32_49 = arith.constant 2 : i32
    return
  }
  func.func @transform_0(%arg0: i32) -> (i32, i32, i32) {
    %c0_i32 = arith.constant 0 : i32
    %c0_i32_0 = arith.constant 0 : i32
    %c0_i32_1 = arith.constant 0 : i32
    return %c0_i32, %c0_i32_0, %arg0 : i32, i32, i32
  }
  func.func @transform_1(%arg0: i32) -> (i32, i32) {
    %c0_i32 = arith.constant 0 : i32
    %c0_i32_0 = arith.constant 0 : i32
    return %c0_i32, %arg0 : i32, i32
  }
  func.func @transform_2(%arg0: i32) -> (i32, i32) {
    %c0_i32 = arith.constant 0 : i32
    %c0_i32_0 = arith.constant 0 : i32
    return %c0_i32, %arg0 : i32, i32
  }
  func.func @transform_3(%arg0: i32) -> (i32, i32) {
    %c0_i32 = arith.constant 0 : i32
    %c0_i32_0 = arith.constant 0 : i32
    %c0_i32_1 = arith.constant 0 : i32
    return %c0_i32, %c0_i32_0 : i32, i32
  }
  func.func @transform_4(%arg0: i32) -> i32 {
    %c0_i32 = arith.constant 0 : i32
    %c0_i32_0 = arith.constant 0 : i32
    return %c0_i32 : i32
  }
  func.func @transform_5(%arg0: i32) -> i32 {
    %c0_i32 = arith.constant 0 : i32
    %c0_i32_0 = arith.constant 0 : i32
    return %c0_i32 : i32
  }
  func.func @transform_6(%arg0: i32) -> i32 {
    %c0_i32 = arith.constant 0 : i32
    %c0_i32_0 = arith.constant 0 : i32
    return %c0_i32 : i32
  }
  func.func @transform_7(%arg0: i32) -> i32 {
    %c0_i32 = arith.constant 0 : i32
    %c0_i32_0 = arith.constant 0 : i32
    return %c0_i32 : i32
  }
  func.func @transform_8(%arg0: i32) -> (i32, i32) {
    %c0_i32 = arith.constant 0 : i32
    %c0_i32_0 = arith.constant 0 : i32
    return %c0_i32, %arg0 : i32, i32
  }
}

</mosaic_0001>

<llo_original>
// kernel: tpu_custom_call.1
$region0: #{tpu_custom_call.1}
  #allocation0 [shape = 'u32[]', space=smem, size = 0x4, offset = 0x4, fixed_abs, tag = 'smem constant byte address 0x4 - core index']
  #allocation1 [shape = 'u32[144,128]{1,0:T(1,128)}', space=vmem, size = 0x12000, scoped, tag = 'internal scratch']
  #allocation2 [shape = 'f32[1]{0:T(128)S(6)}', space=smem, size = 0x200, scoped, tag = 'scoped memory for tpu_custom_call.1']
  %s0 = inlined_call_operand.hbm [shape: f32[5,8,1024], index: 0, kind: input, shape index: {}]
  %s1 = inlined_call_operand.hbm [shape: f32[8,1024], index: 1, kind: input, shape index: {}]
  %s2 = inlined_call_operand.hbm [shape: f32[8,1024], index: 2, kind: input, shape index: {}]
  %s3 = inlined_call_operand.vmem [shape: f32[5,4], index: 3, kind: input, shape index: {}]
  %s4 = inlined_call_operand.vmem [shape: f32[4], index: 4, kind: input, shape index: {}]
  %s5 = inlined_call_operand.vmem [shape: f32[4], index: 5, kind: input, shape index: {}]
  %s6 = inlined_call_operand.vmem [shape: f32[5], index: 6, kind: input, shape index: {}]
  %s7 = inlined_call_operand.<no memory space> [shape: f32[1], index: 7, kind: input, shape index: {}]
  %s8 = inlined_call_operand.hbm [shape: f32[1,1024], index: 8, kind: output, shape index: {}]
  %s9 = sld [smem:[#allocation0]]
  $region100: #{tpu_custom_call.1} parent=0
    _
  %s11 = ssub.s32 1, %s9
  %s12 = scalar_select 0, %s11, %s9
  %13 = sst [smem:[#allocation2]] %s7
  $region1: #{tpu_custom_call.1} parent=0
    #allocation3 [shape = 'u8[163840]{0}', space=vmem, size = 0x28000, scoped, tag = 'input window, operand 0']
    #allocation4 [shape = 's32[2]{0}', space=sflag, size = 0x8, scoped, tag = 'scoped memory for tpu_custom_call.1']
    #allocation5 [shape = 's32[2]{0}', space=sflag, size = 0x8, scoped, tag = 'scoped memory for tpu_custom_call.1']
    #allocation6 [shape = 's32[2]{0}', space=sflag, size = 0x8, scoped, tag = 'scoped memory for tpu_custom_call.1']
    #allocation7 [shape = 'u8[32768]{0}', space=vmem, size = 0x8000, scoped, tag = 'input window, operand 1']
    #allocation8 [shape = 's32[2]{0}', space=sflag, size = 0x8, scoped, tag = 'scoped memory for tpu_custom_call.1']
    #allocation9 [shape = 'u8[32768]{0}', space=vmem, size = 0x8000, scoped, tag = 'input window, operand 2']
    #allocation10 [shape = 'u8[4096]{0}', space=smem, size = 0x1000, scoped, tag = 'input window, operand 3, single buffered']
    #allocation11 [shape = 'u8[512]{0}', space=smem, size = 0x200, scoped, tag = 'input window, operand 4, single buffered']
    #allocation12 [shape = 's32[1]{0}', space=sflag, size = 0x4, scoped, tag = 'scoped memory for tpu_custom_call.1']
    #allocation13 [shape = 'u8[512]{0}', space=smem, size = 0x200, scoped, tag = 'input window, operand 5, single buffered']
    #allocation14 [shape = 'u8[512]{0}', space=smem, size = 0x200, scoped, tag = 'input window, operand 6, single buffered']
    #allocation15 [shape = 's32[1]{0}', space=sflag, size = 0x4, scoped, tag = 'scoped memory for tpu_custom_call.1']
    #allocation16 [shape = 'u8[4096]{0}', space=vmem, size = 0x1000, scoped, tag = 'output window, operand 0']
    %14 = vsyncpa [#allocation4], 0
    %s15 = scalar_lea.sflag [#allocation4], 1
    %16 = vsyncpa %s15, 0
    %17 = vsyncpa [#allocation8], 0
    %s18 = scalar_lea.sflag [#allocation8], 1
    %19 = vsyncpa %s18, 0
    %20 = vsyncpa [#allocation6], 0
    %21 = vsyncpa [#allocation12], 0
    %22 = vsyncpa [#allocation15], 0
    %23 = vsyncpa [#allocation5], 0
    %s24 = scalar_lea.sflag [#allocation5], 1
    %25 = vsyncpa %s24, 0
    loop: start=0, step=1, limit=4
    $region2: #{tpu_custom_call.1} parent=1 // loop_pre_header
      _
    $region3: #{tpu_custom_call.1} parent=1 // loop_header
      %s27 = sphi 0, %s31
      %p28 = scmp.ge.s32.totalorder %s27, 4
      %s37 = sphi 0, %s39
      %s40 = sphi 0, %s37
      %s41 = sphi 0, %s40
      %s57 = sphi 0, %s41
      %s63 = sphi 0, %s65
      %s66 = sphi 0, %s63
      %s67 = sphi 0, %s66
      %s83 = sphi 0, %s67
      %s89 = sphi 0, %s91
      %s92 = sphi 0, %s89
      %s93 = sphi 0, %s92
      %s109 = sphi 0, %s93
      %s113 = sphi 0, %s113
      %s115 = sphi 0, %s113
      %s116 = sphi 0, %s115
      %s130 = sphi 0, %s116
      %s134 = sphi 0, %s134
      %s136 = sphi 0, %s134
      %s137 = sphi 0, %s136
      %s151 = sphi 0, %s137
      %s155 = sphi 0, %s155
      %s157 = sphi 0, %s155
      %s158 = sphi 0, %s157
      %s172 = sphi 0, %s158
      %s176 = sphi 0, %s176
      %s178 = sphi 0, %s176
      %s179 = sphi 0, %s178
      %s193 = sphi 0, %s179
      %s197 = sphi 0, %s197
      %s199 = sphi 0, %s197
      %s200 = sphi 0, %s199
      %s214 = sphi 0, %s200
      %s220 = sphi 0, %s222
      %s223 = sphi 0, %s220
      %s224 = sphi 0, %s223
      %s240 = sphi 0, %s224
    $region4: #{tpu_custom_call.1} parent=1 // loop_header_branch
      %30 = sbr.rel (%p28) target = $region8
    $region5: #{tpu_custom_call.1} parent=1 // loop_body
      %s32 = ssub.s32 %s27, 1
      %s33 = ssub.s32 %s27, 2
      %s34 = sadd.s32 %s27, 1
      %s35 = ssub.s32 %s27, %s34
      %p36 = scmp.eq.s32.totalorder %s35, 0
      %s38 = sadd.s32 %s37, 1
      %s39 = scalar_select %p36, %s37, %s38
      %p42 = pneg %p36
      %p43 = scmp.eq.s32.totalorder %s27, 1
      %p44 = por %p42, %p43
      %p45 = scmp.ne.s32.totalorder %s37, %s40
      %p46 = scmp.eq.s32.totalorder %s27, 0
      %p47 = por %p45, %p46
      %p48 = scmp.ne.s32.totalorder %s37, %s40
      %p49 = scmp.eq.s32.totalorder %s32, 1
      %p50 = por %p48, %p49
      %p51 = scmp.ne.s32.totalorder %s40, %s41
      %p52 = scmp.eq.s32.totalorder %s32, 0
      %p53 = por %p51, %p52
      %p54 = scmp.ne.s32.totalorder %s40, %s41
      %p55 = scmp.eq.s32.totalorder %s33, 1
      %p56 = por %p54, %p55
      %p58 = scmp.ne.s32.totalorder %s41, %s57
      %p59 = scmp.eq.s32.totalorder %s33, 0
      %p60 = por %p58, %p59
      %s61 = ssub.s32 %s27, %s34
      %p62 = scmp.eq.s32.totalorder %s61, 0
      %s64 = sadd.s32 %s63, 1
      %s65 = scalar_select %p62, %s63, %s64
      %p68 = pneg %p62
      %p69 = scmp.eq.s32.totalorder %s27, 1
      %p70 = por %p68, %p69
      %p71 = scmp.ne.s32.totalorder %s63, %s66
      %p72 = scmp.eq.s32.totalorder %s27, 0
      %p73 = por %p71, %p72
      %p74 = scmp.ne.s32.totalorder %s63, %s66
      %p75 = scmp.eq.s32.totalorder %s32, 1
      %p76 = por %p74, %p75
      %p77 = scmp.ne.s32.totalorder %s66, %s67
      %p78 = scmp.eq.s32.totalorder %s32, 0
      %p79 = por %p77, %p78
      %p80 = scmp.ne.s32.totalorder %s66, %s67
      %p81 = scmp.eq.s32.totalorder %s33, 1
      %p82 = por %p80, %p81
      %p84 = scmp.ne.s32.totalorder %s67, %s83
      %p85 = scmp.eq.s32.totalorder %s33, 0
      %p86 = por %p84, %p85
      %s87 = ssub.s32 %s27, %s34
      %p88 = scmp.eq.s32.totalorder %s87, 0
      %s90 = sadd.s32 %s89, 1
      %s91 = scalar_select %p88, %s89, %s90
      %p94 = pneg %p88
      %p95 = scmp.eq.s32.totalorder %s27, 1
      %p96 = por %p94, %p95
      %p97 = scmp.ne.s32.totalorder %s89, %s92
      %p98 = scmp.eq.s32.totalorder %s27, 0
      %p99 = por %p97, %p98
      %p100 = scmp.ne.s32.totalorder %s89, %s92
      %p101 = scmp.eq.s32.totalorder %s32, 1
      %p102 = por %p100, %p101
      %p103 = scmp.ne.s32.totalorder %s92, %s93
      %p104 = scmp.eq.s32.totalorder %s32, 0
      %p105 = por %p103, %p104
      %p106 = scmp.ne.s32.totalorder %s92, %s93
      %p107 = scmp.eq.s32.totalorder %s33, 1
      %p108 = por %p106, %p107
      %p110 = scmp.ne.s32.totalorder %s93, %s109
      %p111 = scmp.eq.s32.totalorder %s33, 0
      %p112 = por %p110, %p111
      %s114 = sadd.s32 %s113, 1
      %p117 = scmp.eq.s32.totalorder %s27, 1
      %p118 = scmp.ne.s32.totalorder %s113, %s115
      %p119 = scmp.eq.s32.totalorder %s27, 0
      %p120 = por %p118, %p119
      %p121 = scmp.ne.s32.totalorder %s113, %s115
      %p122 = scmp.eq.s32.totalorder %s32, 1
      %p123 = por %p121, %p122
      %p124 = scmp.ne.s32.totalorder %s115, %s116
      %p125 = scmp.eq.s32.totalorder %s32, 0
      %p126 = por %p124, %p125
      %p127 = scmp.ne.s32.totalorder %s115, %s116
      %p128 = scmp.eq.s32.totalorder %s33, 1
      %p129 = por %p127, %p128
      %p131 = scmp.ne.s32.totalorder %s116, %s130
      %p132 = scmp.eq.s32.totalorder %s33, 0
      %p133 = por %p131, %p132
      %s135 = sadd.s32 %s134, 1
      %p138 = scmp.eq.s32.totalorder %s27, 1
      %p139 = scmp.ne.s32.totalorder %s134, %s136
      %p140 = scmp.eq.s32.totalorder %s27, 0
      %p141 = por %p139, %p140
      %p142 = scmp.ne.s32.totalorder %s134, %s136
      %p143 = scmp.eq.s32.totalorder %s32, 1
      %p144 = por %p142, %p143
      %p145 = scmp.ne.s32.totalorder %s136, %s137
      %p146 = scmp.eq.s32.totalorder %s32, 0
      %p147 = por %p145, %p146
      %p148 = scmp.ne.s32.totalorder %s136, %s137
      %p149 = scmp.eq.s32.totalorder %s33, 1
      %p150 = por %p148, %p149
      %p152 = scmp.ne.s32.totalorder %s137, %s151
      %p153 = scmp.eq.s32.totalorder %s33, 0
      %p154 = por %p152, %p153
      %s156 = sadd.s32 %s155, 1
      %p159 = scmp.eq.s32.totalorder %s27, 1
      %p160 = scmp.ne.s32.totalorder %s155, %s157
      %p161 = scmp.eq.s32.totalorder %s27, 0
      %p162 = por %p160, %p161
      %p163 = scmp.ne.s32.totalorder %s155, %s157
      %p164 = scmp.eq.s32.totalorder %s32, 1
      %p165 = por %p163, %p164
      %p166 = scmp.ne.s32.totalorder %s157, %s158
      %p167 = scmp.eq.s32.totalorder %s32, 0
      %p168 = por %p166, %p167
      %p169 = scmp.ne.s32.totalorder %s157, %s158
      %p170 = scmp.eq.s32.totalorder %s33, 1
      %p171 = por %p169, %p170
      %p173 = scmp.ne.s32.totalorder %s158, %s172
      %p174 = scmp.eq.s32.totalorder %s33, 0
      %p175 = por %p173, %p174
      %s177 = sadd.s32 %s176, 1
      %p180 = scmp.eq.s32.totalorder %s27, 1
      %p181 = scmp.ne.s32.totalorder %s176, %s178
      %p182 = scmp.eq.s32.totalorder %s27, 0
      %p183 = por %p181, %p182
      %p184 = scmp.ne.s32.totalorder %s176, %s178
      %p185 = scmp.eq.s32.totalorder %s32, 1
      %p186 = por %p184, %p185
      %p187 = scmp.ne.s32.totalorder %s178, %s179
      %p188 = scmp.eq.s32.totalorder %s32, 0
      %p189 = por %p187, %p188
      %p190 = scmp.ne.s32.totalorder %s178, %s179
      %p191 = scmp.eq.s32.totalorder %s33, 1
      %p192 = por %p190, %p191
      %p194 = scmp.ne.s32.totalorder %s179, %s193
      %p195 = scmp.eq.s32.totalorder %s33, 0
      %p196 = por %p194, %p195
      %s198 = sadd.s32 %s197, 1
      %p201 = scmp.eq.s32.totalorder %s27, 1
      %p202 = scmp.ne.s32.totalorder %s197, %s199
      %p203 = scmp.eq.s32.totalorder %s27, 0
      %p204 = por %p202, %p203
      %p205 = scmp.ne.s32.totalorder %s197, %s199
      %p206 = scmp.eq.s32.totalorder %s32, 1
      %p207 = por %p205, %p206
      %p208 = scmp.ne.s32.totalorder %s199, %s200
      %p209 = scmp.eq.s32.totalorder %s32, 0
      %p210 = por %p208, %p209
      %p211 = scmp.ne.s32.totalorder %s199, %s200
      %p212 = scmp.eq.s32.totalorder %s33, 1
      %p213 = por %p211, %p212
      %p215 = scmp.ne.s32.totalorder %s200, %s214
      %p216 = scmp.eq.s32.totalorder %s33, 0
      %p217 = por %p215, %p216
      %s218 = ssub.s32 %s27, %s34
      %p219 = scmp.eq.s32.totalorder %s218, 0
      %s221 = sadd.s32 %s220, 1
      %s222 = scalar_select %p219, %s220, %s221
      %p225 = pneg %p219
      %p226 = scmp.eq.s32.totalorder %s27, 1
      %p227 = por %p225, %p226
      %p228 = scmp.ne.s32.totalorder %s220, %s223
      %p229 = scmp.eq.s32.totalorder %s27, 0
      %p230 = por %p228, %p229
      %p231 = scmp.ne.s32.totalorder %s220, %s223
      %p232 = scmp.eq.s32.totalorder %s32, 1
      %p233 = por %p231, %p232
      %p234 = scmp.ne.s32.totalorder %s223, %s224
      %p235 = scmp.eq.s32.totalorder %s32, 0
      %p236 = por %p234, %p235
      %p237 = scmp.ne.s32.totalorder %s223, %s224
      %p238 = scmp.eq.s32.totalorder %s33, 1
      %p239 = por %p237, %p238
      %p241 = scmp.ne.s32.totalorder %s224, %s240
      %p242 = scmp.eq.s32.totalorder %s33, 0
      %p243 = por %p241, %p242
      %p244 = scmp.le.s32.totalorder 1, %s27
      %p245 = scmp.lt.s32.totalorder %s27, 3
      %p246 = pnand %p244, %p245
      %p247 = pneg %p246
      // Predicated region
      $region9: #{tpu_custom_call.1} parent=5 // pred_check
        _
      $region10: #{tpu_custom_call.1} parent=5 // pred_check_branch
        %249 = sbr.rel (%p246) target = $region12
      $region11: #{tpu_custom_call.1} parent=5 // pred_region
        %s250 = ssub.s32 %s27, 1
        // Predicated region
        $region13: #{tpu_custom_call.1} parent=11 // pred_check
          %p251 = pneg %p126
        $region14: #{tpu_custom_call.1} parent=11 // pred_check_branch
          %253 = sbr.rel (%p251) target = $region16
        $region15: #{tpu_custom_call.1} parent=11 // pred_region
          %s255 = ssub.s32 128, 128
          %256 = vsyncadd [#allocation6], %s255
          %s258 = sshll.u32 %s3, 4
          %s259 = int_to_ptr.vmem [resolvable:$true] %s258
          %261 = dma.vmem_to_smem %s259, 128, [#allocation10], [#allocation6]
        $region16: #{tpu_custom_call.1} parent=11 // pred_fallthru
          _
        // Predicated region
        $region17: #{tpu_custom_call.1} parent=11 // pred_check
          %p262 = pneg %p147
        $region18: #{tpu_custom_call.1} parent=11 // pred_check_branch
          %264 = sbr.rel (%p262) target = $region20
        $region19: #{tpu_custom_call.1} parent=11 // pred_region
          %s266 = ssub.s32 16, 16
          %267 = vsyncadd [#allocation12], %s266
          %s269 = sshll.u32 %s4, 4
          %s270 = int_to_ptr.vmem [resolvable:$true] %s269
          %272 = dma.vmem_to_smem %s270, 16, [#allocation11], [#allocation12]
        $region20: #{tpu_custom_call.1} parent=11 // pred_fallthru
          _
        // Predicated region
        $region21: #{tpu_custom_call.1} parent=11 // pred_check
          %p273 = pneg %p168
        $region22: #{tpu_custom_call.1} parent=11 // pred_check_branch
          %275 = sbr.rel (%p273) target = $region24
        $region23: #{tpu_custom_call.1} parent=11 // pred_region
          %s277 = ssub.s32 16, 16
          %278 = vsyncadd [#allocation12], %s277
          %s280 = sshll.u32 %s5, 4
          %s281 = int_to_ptr.vmem [resolvable:$true] %s280
          %283 = dma.vmem_to_smem %s281, 16, [#allocation13], [#allocation12]
        $region24: #{tpu_custom_call.1} parent=11 // pred_fallthru
          _
        // Predicated region
        $region25: #{tpu_custom_call.1} parent=11 // pred_check
          %p284 = pneg %p189
        $region26: #{tpu_custom_call.1} parent=11 // pred_check_branch
          %286 = sbr.rel (%p284) target = $region28
        $region27: #{tpu_custom_call.1} parent=11 // pred_region
          %s288 = ssub.s32 16, 16
          %289 = vsyncadd [#allocation15], %s288
          %s291 = sshll.u32 %s6, 4
          %s292 = int_to_ptr.vmem [resolvable:$true] %s291
          %294 = dma.vmem_to_smem %s292, 16, [#allocation14], [#allocation15]
        $region28: #{tpu_custom_call.1} parent=11 // pred_fallthru
          _
        // Predicated region
        $region29: #{tpu_custom_call.1} parent=11 // pred_check
          %p295 = pneg %p210
        $region30: #{tpu_custom_call.1} parent=11 // pred_check_branch
          %297 = sbr.rel (%p295) target = $region32
        $region31: #{tpu_custom_call.1} parent=11 // pred_region
          _
        $region32: #{tpu_custom_call.1} parent=11 // pred_fallthru
          _
      $region12: #{tpu_custom_call.1} parent=5 // pred_fallthru
        _
      %p298 = scmp.lt.s32.totalorder %s27, 2
      // Predicated region
      $region33: #{tpu_custom_call.1} parent=5 // pred_check
        %p299 = pneg %p298
      $region34: #{tpu_custom_call.1} parent=5 // pred_check_branch
        %301 = sbr.rel (%p299) target = $region36
      $region35: #{tpu_custom_call.1} parent=5 // pred_region
        // Predicated region
        $region37: #{tpu_custom_call.1} parent=35 // pred_check
          %p302 = pneg %p47
        $region38: #{tpu_custom_call.1} parent=35 // pred_check_branch
          %304 = sbr.rel (%p302) target = $region40
        $region39: #{tpu_custom_call.1} parent=35 // pred_region
          %s305 = sand.u32 %s37, 1
          %s306 = scalar_lea.sflag [#allocation4], %s305
          %s307 = sand.u32 %s37, 1
          %s308 = smul.addr %s307, 160
          %s309 = scalar_lea.vmem [#allocation3], %s308
          %s310 = smul.u32 4, %s27
          %s312 = ssub.s32 2560, 2560
          %313 = vsyncadd %s306, %s312
          %s314 = smul.addr %s310, 128
          %s315 = scalar_lea.hbm %s0, %s314
          %s316 = sshll.u32 %s309, 4
          %s317 = int_to_ptr.vmem [resolvable:$true] %s316
          %322 = dma.hbm_to_vmem [thread:$0]  %s315, 2560, %s317, %s306, 1024, 512, 32
        $region40: #{tpu_custom_call.1} parent=35 // pred_fallthru
          _
        // Predicated region
        $region41: #{tpu_custom_call.1} parent=35 // pred_check
          %p323 = pneg %p73
        $region42: #{tpu_custom_call.1} parent=35 // pred_check_branch
          %325 = sbr.rel (%p323) target = $region44
        $region43: #{tpu_custom_call.1} parent=35 // pred_region
          %s326 = sand.u32 %s27, 1
          %s327 = scalar_lea.sflag [#allocation8], %s326
          %s328 = sand.u32 %s63, 1
          %s329 = smul.addr %s328, 32
          %s330 = scalar_lea.vmem [#allocation7], %s329
          %s331 = smul.u32 4, %s27
          %s333 = ssub.s32 512, 512
          %334 = vsyncadd %s327, %s333
          %s335 = smul.addr %s331, 128
          %s336 = scalar_lea.hbm %s1, %s335
          %s338 = sshll.u32 %s330, 4
          %s339 = int_to_ptr.vmem [resolvable:$true] %s338
          %341 = dma.hbm_to_vmem [thread:$0]  %s336, 512, %s339, %s327
        $region44: #{tpu_custom_call.1} parent=35 // pred_fallthru
          _
        // Predicated region
        $region45: #{tpu_custom_call.1} parent=35 // pred_check
          %p342 = pneg %p99
        $region46: #{tpu_custom_call.1} parent=35 // pred_check_branch
          %344 = sbr.rel (%p342) target = $region48
        $region47: #{tpu_custom_call.1} parent=35 // pred_region
          %s345 = sand.u32 %s27, 1
          %s346 = scalar_lea.sflag [#allocation8], %s345
          %s347 = sand.u32 %s89, 1
          %s348 = smul.addr %s347, 32
          %s349 = scalar_lea.vmem [#allocation9], %s348
          %s350 = smul.u32 4, %s27
          %s352 = ssub.s32 512, 512
          %353 = vsyncadd %s346, %s352
          %s354 = smul.addr %s350, 128
          %s355 = scalar_lea.hbm %s2, %s354
          %s357 = sshll.u32 %s349, 4
          %s358 = int_to_ptr.vmem [resolvable:$true] %s357
          %360 = dma.hbm_to_vmem [thread:$0]  %s355, 512, %s358, %s346
        $region48: #{tpu_custom_call.1} parent=35 // pred_fallthru
          _
      $region36: #{tpu_custom_call.1} parent=5 // pred_fallthru
        _
      %p361 = scmp.le.s32.totalorder 1, %s27
      %p362 = scmp.lt.s32.totalorder %s27, 3
      %p363 = pnand %p361, %p362
      %p364 = pneg %p363
      // Predicated region
      $region49: #{tpu_custom_call.1} parent=5 // pred_check
        _
      $region50: #{tpu_custom_call.1} parent=5 // pred_check_branch
        %366 = sbr.rel (%p363) target = $region52
      $region51: #{tpu_custom_call.1} parent=5 // pred_region
        %s367 = ssub.s32 %s27, 1
        %s368 = sand.u32 %s40, 1
        %s369 = scalar_lea.sflag [#allocation4], %s368
        %s370 = sand.u32 %s40, 1
        %s371 = smul.addr %s370, 160
        %s372 = scalar_lea.vmem [#allocation3], %s371
        // Predicated region
        $region53: #{tpu_custom_call.1} parent=51 // pred_check
          %p373 = pneg %p53
        $region54: #{tpu_custom_call.1} parent=51 // pred_check_branch
          %375 = sbr.rel (%p373) target = $region56
        $region55: #{tpu_custom_call.1} parent=51 // pred_region
          %376 = dma.done %s369, 2560
        $region56: #{tpu_custom_call.1} parent=51 // pred_fallthru
          _
        %s377 = sand.u32 %s32, 1
        %s378 = scalar_lea.sflag [#allocation8], %s377
        %s379 = sand.u32 %s66, 1
        %s380 = smul.addr %s379, 32
        %s381 = scalar_lea.vmem [#allocation7], %s380
        // Predicated region
        $region57: #{tpu_custom_call.1} parent=51 // pred_check
          %p382 = pneg %p79
        $region58: #{tpu_custom_call.1} parent=51 // pred_check_branch
          %384 = sbr.rel (%p382) target = $region60
        $region59: #{tpu_custom_call.1} parent=51 // pred_region
          %385 = dma.done %s378, 512
        $region60: #{tpu_custom_call.1} parent=51 // pred_fallthru
          _
        %s386 = sand.u32 %s32, 1
        %s387 = scalar_lea.sflag [#allocation8], %s386
        %s388 = sand.u32 %s92, 1
        %s389 = smul.addr %s388, 32
        %s390 = scalar_lea.vmem [#allocation9], %s389
        // Predicated region
        $region61: #{tpu_custom_call.1} parent=51 // pred_check
          %p391 = pneg %p105
        $region62: #{tpu_custom_call.1} parent=51 // pred_check_branch
          %393 = sbr.rel (%p391) target = $region64
        $region63: #{tpu_custom_call.1} parent=51 // pred_region
          %394 = dma.done %s387, 512
        $region64: #{tpu_custom_call.1} parent=51 // pred_fallthru
          _
        // Predicated region
        $region65: #{tpu_custom_call.1} parent=51 // pred_check
          %p395 = pneg %p126
        $region66: #{tpu_custom_call.1} parent=51 // pred_check_branch
          %397 = sbr.rel (%p395) target = $region68
        $region67: #{tpu_custom_call.1} parent=51 // pred_region
          %398 = dma.done [#allocation6], 128
        $region68: #{tpu_custom_call.1} parent=51 // pred_fallthru
          _
        // Predicated region
        $region69: #{tpu_custom_call.1} parent=51 // pred_check
          %p399 = pneg %p147
        $region70: #{tpu_custom_call.1} parent=51 // pred_check_branch
          %401 = sbr.rel (%p399) target = $region72
        $region71: #{tpu_custom_call.1} parent=51 // pred_region
          %402 = dma.done [#allocation12], 16
        $region72: #{tpu_custom_call.1} parent=51 // pred_fallthru
          _
        // Predicated region
        $region73: #{tpu_custom_call.1} parent=51 // pred_check
          %p403 = pneg %p168
        $region74: #{tpu_custom_call.1} parent=51 // pred_check_branch
          %405 = sbr.rel (%p403) target = $region76
        $region75: #{tpu_custom_call.1} parent=51 // pred_region
          %406 = dma.done [#allocation12], 16
        $region76: #{tpu_custom_call.1} parent=51 // pred_fallthru
          _
        // Predicated region
        $region77: #{tpu_custom_call.1} parent=51 // pred_check
          %p407 = pneg %p189
        $region78: #{tpu_custom_call.1} parent=51 // pred_check_branch
          %409 = sbr.rel (%p407) target = $region80
        $region79: #{tpu_custom_call.1} parent=51 // pred_region
          %410 = dma.done [#allocation15], 16
        $region80: #{tpu_custom_call.1} parent=51 // pred_fallthru
          _
        %411 = sfence
        %s412 = sand.u32 %s40, 1
        %s413 = scalar_lea.sflag [#allocation4], %s412
        %s414 = sand.u32 %s40, 1
        %s415 = smul.addr %s414, 160
        %s416 = scalar_lea.vmem [#allocation3], %s415
        %p417 = pneg %p53
        %p418 = pneg %p50
        %s419 = sand.u32 %s32, 1
        %s420 = scalar_lea.sflag [#allocation8], %s419
        %s421 = sand.u32 %s66, 1
        %s422 = smul.addr %s421, 32
        %s423 = scalar_lea.vmem [#allocation7], %s422
        %p424 = pneg %p79
        %p425 = pneg %p76
        %s426 = sand.u32 %s32, 1
        %s427 = scalar_lea.sflag [#allocation8], %s426
        %s428 = sand.u32 %s92, 1
        %s429 = smul.addr %s428, 32
        %s430 = scalar_lea.vmem [#allocation9], %s429
        %p431 = pneg %p105
        %p432 = pneg %p102
        %p433 = pneg %p126
        %p434 = pneg %p123
        %p435 = pneg %p147
        %p436 = pneg %p144
        %p437 = pneg %p168
        %p438 = pneg %p165
        %p439 = pneg %p189
        %p440 = pneg %p186
        %p441 = pneg %p210
        %p442 = pneg %p207
        %p443 = pneg %p236
        %p444 = pneg %p233
        %s445 = sand.u32 %s223, 1
        %s446 = scalar_lea.sflag [#allocation5], %s445
        %s447 = sand.u32 %s223, 1
        %s448 = smul.addr %s447, 4
        %s449 = scalar_lea.vmem [#allocation16], %s448
        %s450 = smul.u32 4, %s32
        %s451 = smul.u32 4, %s32
        %s452 = smul.u32 4, %s32
        %s453 = smul.u32 4, %s32
        %s454 = sld [smem:[#allocation10]]
        %s455 = sld [smem:[#allocation10 + $0x1]]
        %s456 = sld [smem:[#allocation10 + $0x2]]
        %s457 = sld [smem:[#allocation10 + $0x3]]
        %s458 = sld [smem:[#allocation10 + $0x80]]
        %s459 = sld [smem:[#allocation10 + $0x81]]
        %s460 = sld [smem:[#allocation10 + $0x82]]
        %s461 = sld [smem:[#allocation10 + $0x83]]
        %s462 = sld [smem:[#allocation10 + $0x100]]
        %s463 = sld [smem:[#allocation10 + $0x101]]
        %s464 = sld [smem:[#allocation10 + $0x102]]
        %s465 = sld [smem:[#allocation10 + $0x103]]
        %s466 = sld [smem:[#allocation10 + $0x180]]
        %s467 = sld [smem:[#allocation10 + $0x181]]
        %s468 = sld [smem:[#allocation10 + $0x182]]
        %s469 = sld [smem:[#allocation10 + $0x183]]
        %s470 = sld [smem:[#allocation10 + $0x200]]
        %s471 = sld [smem:[#allocation10 + $0x201]]
        %s472 = sld [smem:[#allocation10 + $0x202]]
        %s473 = sld [smem:[#allocation10 + $0x203]]
        %s474 = sld [smem:[#allocation11]]
        %s475 = sld [smem:[#allocation11 + $0x1]]
        %s476 = sld [smem:[#allocation11 + $0x2]]
        %s477 = sld [smem:[#allocation11 + $0x3]]
        %s478 = sld [smem:[#allocation13]]
        %s479 = sld [smem:[#allocation13 + $0x1]]
        %s480 = sld [smem:[#allocation13 + $0x2]]
        %s481 = sld [smem:[#allocation13 + $0x3]]
        %s482 = sld [smem:[#allocation14]]
        %s483 = sld [smem:[#allocation14 + $0x1]]
        %s484 = sld [smem:[#allocation14 + $0x2]]
        %s485 = sld [smem:[#allocation14 + $0x3]]
        %s486 = sld [smem:[#allocation14 + $0x4]]
        %s487 = sld [smem:[#allocation2]]
        loop: start=0, step=1, limit=2
        $region81: #{tpu_custom_call.1} parent=51 // loop_pre_header
          _
        $region82: #{tpu_custom_call.1} parent=51 // loop_header
          %s489 = sphi 0, %s493
          %p490 = scmp.ge.s32.totalorder %s489, 2
        $region83: #{tpu_custom_call.1} parent=51 // loop_header_branch
          %492 = sbr.rel (%p490) target = $region87
        $region84: #{tpu_custom_call.1} parent=51 // loop_body
          %s494 = smul.u32 %s489, 256
          %s495 = sshra.s32 %s494, 7
          %s496 = sand.u32 %s494, 127
          %s497 = smul.addr %s495, 8
          %s498 = scalar_lea.vmem %s381, %s497 [#allocation7]
          %v499 = vld [vmem:[%s498] sm:$0xff]
          %v500 = vld [vmem:[%s498 + $0x8] sm:$0xff]
          %s501 = smul.addr %s495, 8
          %s502 = scalar_lea.vmem %s390, %s501 [#allocation9]
          %v503 = vld [vmem:[%s502] sm:$0xff]
          %v504 = vld [vmem:[%s502 + $0x8] sm:$0xff]
          %v505 = vmul.f32 %v503, %v499
          %v506 = vmul.f32 %v504, %v500
          %v507 = vrot.slane %v505, 4
          %v508 = vadd.f32 %v505, %v507
          %v509 = vrot.slane %v508, 2
          %v510 = vadd.f32 %v508, %v509
          %v511 = vrot.slane %v510, 1
          %v512 = vadd.f32 %v510, %v511
          %v513 = vrot.slane %v506, 4
          %v514 = vadd.f32 %v506, %v513
          %v515 = vrot.slane %v514, 2
          %v516 = vadd.f32 %v514, %v515
          %v517 = vrot.slane %v516, 1
          %v518 = vadd.f32 %v516, %v517
          %s519 = smul.addr %s495, 8
          %s520 = scalar_lea.vmem %s372, %s519 [#allocation3]
          %v521 = vld [vmem:[%s520] sm:$0xff]
          %v522 = vld [vmem:[%s520 + $0x8] sm:$0xff]
          %v523 = vmul.f32 %v521, %v499
          %v524 = vmul.f32 %v522, %v500
          %s525 = sadd.s32 %s495, 4
          %s526 = smul.addr %s525, 8
          %s527 = scalar_lea.vmem %s372, %s526 [#allocation3]
          %v528 = vld [vmem:[%s527] sm:$0xff]
          %v529 = vld [vmem:[%s527 + $0x8] sm:$0xff]
          %v530 = vmul.f32 %v528, %v499
          %v531 = vmul.f32 %v529, %v500
          %s532 = sadd.s32 %s495, 8
          %s533 = smul.addr %s532, 8
          %s534 = scalar_lea.vmem %s372, %s533 [#allocation3]
          %v535 = vld [vmem:[%s534] sm:$0xff]
          %v536 = vld [vmem:[%s534 + $0x8] sm:$0xff]
          %v537 = vmul.f32 %v535, %v499
          %v538 = vmul.f32 %v536, %v500
          %s539 = sadd.s32 %s495, 12
          %s540 = smul.addr %s539, 8
          %s541 = scalar_lea.vmem %s372, %s540 [#allocation3]
          %v542 = vld [vmem:[%s541] sm:$0xff]
          %v543 = vld [vmem:[%s541 + $0x8] sm:$0xff]
          %v544 = vmul.f32 %v542, %v499
          %v545 = vmul.f32 %v543, %v500
          %s546 = sadd.s32 %s495, 16
          %s547 = smul.addr %s546, 8
          %s548 = scalar_lea.vmem %s372, %s547 [#allocation3]
          %v549 = vld [vmem:[%s548] sm:$0xff]
          %v550 = vld [vmem:[%s548 + $0x8] sm:$0xff]
          %v551 = vmul.f32 %v549, %v499
          %v552 = vmul.f32 %v550, %v500
          %v553 = vrot.slane %v523, 7
          %v554 = vrot.slane %v524, 7
          %v555 = vmul.f32 %v523, %v553
          %v556 = vmul.f32 %v524, %v554
          %v557 = vrot.slane %v530, 7
          %v558 = vrot.slane %v531, 7
          %v559 = vmul.f32 %v530, %v557
          %v560 = vmul.f32 %v531, %v558
          %v561 = vrot.slane %v537, 7
          %v562 = vrot.slane %v538, 7
          %v563 = vmul.f32 %v537, %v561
          %v564 = vmul.f32 %v538, %v562
          %v565 = vrot.slane %v544, 7
          %v566 = vrot.slane %v545, 7
          %v567 = vmul.f32 %v544, %v565
          %v568 = vmul.f32 %v545, %v566
          %v569 = vrot.slane %v551, 7
          %v570 = vrot.slane %v552, 7
          %v571 = vmul.f32 %v551, %v569
          %v572 = vmul.f32 %v552, %v570
          %v573 = vstv %s454
          %v574 = vmul.f32 %v555, %v573
          %v575 = vmul.f32 %v556, %v573
          %v576 = vstv %s458
          %v577 = vmul.f32 %v559, %v576
          %v578 = vmul.f32 %v560, %v576
          %v579 = vadd.f32 %v574, %v577
          %v580 = vadd.f32 %v575, %v578
          %v581 = vstv %s462
          %v582 = vmul.f32 %v563, %v581
          %v583 = vmul.f32 %v564, %v581
          %v584 = vadd.f32 %v579, %v582
          %v585 = vadd.f32 %v580, %v583
          %v586 = vstv %s466
          %v587 = vmul.f32 %v567, %v586
          %v588 = vmul.f32 %v568, %v586
          %v589 = vadd.f32 %v584, %v587
          %v590 = vadd.f32 %v585, %v588
          %v591 = vstv %s470
          %v592 = vmul.f32 %v571, %v591
          %v593 = vmul.f32 %v572, %v591
          %v594 = vadd.f32 %v589, %v592
          %v595 = vadd.f32 %v590, %v593
          %v596 = vstv %s474
          %v597 = vadd.f32 %v594, %v596
          %v598 = vadd.f32 %v595, %v596
          %v599 = vmax.f32 %v597, 0.0
          %v600 = vmax.f32 %v598, 0.0
          %v601 = vstv %s478
          %v602 = vmul.f32 %v599, %v601
          %v603 = vmul.f32 %v600, %v601
          %v604 = vstv %s455
          %v605 = vmul.f32 %v555, %v604
          %v606 = vmul.f32 %v556, %v604
          %v607 = vstv %s459
          %v608 = vmul.f32 %v559, %v607
          %v609 = vmul.f32 %v560, %v607
          %v610 = vadd.f32 %v605, %v608
          %v611 = vadd.f32 %v606, %v609
          %v612 = vstv %s463
          %v613 = vmul.f32 %v563, %v612
          %v614 = vmul.f32 %v564, %v612
          %v615 = vadd.f32 %v610, %v613
          %v616 = vadd.f32 %v611, %v614
          %v617 = vstv %s467
          %v618 = vmul.f32 %v567, %v617
          %v619 = vmul.f32 %v568, %v617
          %v620 = vadd.f32 %v615, %v618
          %v621 = vadd.f32 %v616, %v619
          %v622 = vstv %s471
          %v623 = vmul.f32 %v571, %v622
          %v624 = vmul.f32 %v572, %v622
          %v625 = vadd.f32 %v620, %v623
          %v626 = vadd.f32 %v621, %v624
          %v627 = vstv %s475
          %v628 = vadd.f32 %v625, %v627
          %v629 = vadd.f32 %v626, %v627
          %v630 = vmax.f32 %v628, 0.0
          %v631 = vmax.f32 %v629, 0.0
          %v632 = vstv %s479
          %v633 = vmul.f32 %v630, %v632
          %v634 = vmul.f32 %v631, %v632
          %v635 = vadd.f32 %v602, %v633
          %v636 = vadd.f32 %v603, %v634
          %v637 = vstv %s456
          %v638 = vmul.f32 %v555, %v637
          %v639 = vmul.f32 %v556, %v637
          %v640 = vstv %s460
          %v641 = vmul.f32 %v559, %v640
          %v642 = vmul.f32 %v560, %v640
          %v643 = vadd.f32 %v638, %v641
          %v644 = vadd.f32 %v639, %v642
          %v645 = vstv %s464
          %v646 = vmul.f32 %v563, %v645
          %v647 = vmul.f32 %v564, %v645
          %v648 = vadd.f32 %v643, %v646
          %v649 = vadd.f32 %v644, %v647
          %v650 = vstv %s468
          %v651 = vmul.f32 %v567, %v650
          %v652 = vmul.f32 %v568, %v650
          %v653 = vadd.f32 %v648, %v651
          %v654 = vadd.f32 %v649, %v652
          %v655 = vstv %s472
          %v656 = vmul.f32 %v571, %v655
          %v657 = vmul.f32 %v572, %v655
          %v658 = vadd.f32 %v653, %v656
          %v659 = vadd.f32 %v654, %v657
          %v660 = vstv %s476
          %v661 = vadd.f32 %v658, %v660
          %v662 = vadd.f32 %v659, %v660
          %v663 = vmax.f32 %v661, 0.0
          %v664 = vmax.f32 %v662, 0.0
          %v665 = vstv %s480
          %v666 = vmul.f32 %v663, %v665
          %v667 = vmul.f32 %v664, %v665
          %v668 = vadd.f32 %v635, %v666
          %v669 = vadd.f32 %v636, %v667
          %v670 = vstv %s457
          %v671 = vmul.f32 %v555, %v670
          %v672 = vmul.f32 %v556, %v670
          %v673 = vstv %s461
          %v674 = vmul.f32 %v559, %v673
          %v675 = vmul.f32 %v560, %v673
          %v676 = vadd.f32 %v671, %v674
          %v677 = vadd.f32 %v672, %v675
          %v678 = vstv %s465
          %v679 = vmul.f32 %v563, %v678
          %v680 = vmul.f32 %v564, %v678
          %v681 = vadd.f32 %v676, %v679
          %v682 = vadd.f32 %v677, %v680
          %v683 = vstv %s469
          %v684 = vmul.f32 %v567, %v683
          %v685 = vmul.f32 %v568, %v683
          %v686 = vadd.f32 %v681, %v684
          %v687 = vadd.f32 %v682, %v685
          %v688 = vstv %s473
          %v689 = vmul.f32 %v571, %v688
          %v690 = vmul.f32 %v572, %v688
          %v691 = vadd.f32 %v686, %v689
          %v692 = vadd.f32 %v687, %v690
          %v693 = vstv %s477
          %v694 = vadd.f32 %v691, %v693
          %v695 = vadd.f32 %v692, %v693
          %v696 = vmax.f32 %v694, 0.0
          %v697 = vmax.f32 %v695, 0.0
          %v698 = vstv %s481
          %v699 = vmul.f32 %v696, %v698
          %v700 = vmul.f32 %v697, %v698
          %v701 = vadd.f32 %v668, %v699
          %v702 = vadd.f32 %v669, %v700
          %v703 = vstv %s482
          %v704 = vmul.f32 %v555, %v703
          %v705 = vmul.f32 %v556, %v703
          %v706 = vstv %s483
          %v707 = vmul.f32 %v559, %v706
          %v708 = vmul.f32 %v560, %v706
          %v709 = vadd.f32 %v704, %v707
          %v710 = vadd.f32 %v705, %v708
          %v711 = vstv %s484
          %v712 = vmul.f32 %v563, %v711
          %v713 = vmul.f32 %v564, %v711
          %v714 = vadd.f32 %v709, %v712
          %v715 = vadd.f32 %v710, %v713
          %v716 = vstv %s485
          %v717 = vmul.f32 %v567, %v716
          %v718 = vmul.f32 %v568, %v716
          %v719 = vadd.f32 %v714, %v717
          %v720 = vadd.f32 %v715, %v718
          %v721 = vstv %s486
          %v722 = vmul.f32 %v571, %v721
          %v723 = vmul.f32 %v572, %v721
          %v724 = vadd.f32 %v719, %v722
          %v725 = vadd.f32 %v720, %v723
          %v726 = vrot.slane %v701, 4
          %v727 = vmax.f32 %v701, %v726
          %v728 = vrot.slane %v727, 2
          %v729 = vmax.f32 %v727, %v728
          %v730 = vrot.slane %v729, 1
          %v731 = vmax.f32 %v729, %v730
          %v732 = vrot.slane %v702, 4
          %v733 = vmax.f32 %v702, %v732
          %v734 = vrot.slane %v733, 2
          %v735 = vmax.f32 %v733, %v734
          %v736 = vrot.slane %v735, 1
          %v737 = vmax.f32 %v735, %v736
          %v738 = vsub.f32 %v701, %v731
          %v739 = vsub.f32 %v702, %v737
          %v740 = vmul.f32 %v738, 1.442695
          %v741 = vpow.pop %v740
          %v742 = vmul.f32 %v739, 1.442695
          %v743 = vpow.pop %v742
          %v744 = vrot.slane %v741, 4
          %v745 = vadd.f32 %v741, %v744
          %v746 = vrot.slane %v745, 2
          %v747 = vadd.f32 %v745, %v746
          %v748 = vrot.slane %v747, 1
          %v749 = vadd.f32 %v747, %v748
          %v750 = vrot.slane %v743, 4
          %v751 = vadd.f32 %v743, %v750
          %v752 = vrot.slane %v751, 2
          %v753 = vadd.f32 %v751, %v752
          %v754 = vrot.slane %v753, 1
          %v755 = vadd.f32 %v753, %v754
          %v756 = vmul.f32 %v741, %v724
          %v757 = vmul.f32 %v743, %v725
          %v758 = vrot.slane %v756, 4
          %v759 = vadd.f32 %v756, %v758
          %v760 = vrot.slane %v759, 2
          %v761 = vadd.f32 %v759, %v760
          %v762 = vrot.slane %v761, 1
          %v763 = vadd.f32 %v761, %v762
          %v764 = vrot.slane %v757, 4
          %v765 = vadd.f32 %v757, %v764
          %v766 = vrot.slane %v765, 2
          %v767 = vadd.f32 %v765, %v766
          %v768 = vrot.slane %v767, 1
          %v769 = vadd.f32 %v767, %v768
          %v770 = vrot.slane %v523, 6
          %v771 = vrot.slane %v524, 6
          %v772 = vmul.f32 %v523, %v770
          %v773 = vmul.f32 %v524, %v771
          %v774 = vrot.slane %v530, 6
          %v775 = vrot.slane %v531, 6
          %v776 = vmul.f32 %v530, %v774
          %v777 = vmul.f32 %v531, %v775
          %v778 = vrot.slane %v537, 6
          %v779 = vrot.slane %v538, 6
          %v780 = vmul.f32 %v537, %v778
          %v781 = vmul.f32 %v538, %v779
          %v782 = vrot.slane %v544, 6
          %v783 = vrot.slane %v545, 6
          %v784 = vmul.f32 %v544, %v782
          %v785 = vmul.f32 %v545, %v783
          %v786 = vrot.slane %v551, 6
          %v787 = vrot.slane %v552, 6
          %v788 = vmul.f32 %v551, %v786
          %v789 = vmul.f32 %v552, %v787
          %v790 = vmul.f32 %v772, %v573
          %v791 = vmul.f32 %v773, %v573
          %v792 = vmul.f32 %v776, %v576
          %v793 = vmul.f32 %v777, %v576
          %v794 = vadd.f32 %v790, %v792
          %v795 = vadd.f32 %v791, %v793
          %v796 = vmul.f32 %v780, %v581
          %v797 = vmul.f32 %v781, %v581
          %v798 = vadd.f32 %v794, %v796
          %v799 = vadd.f32 %v795, %v797
          %v800 = vmul.f32 %v784, %v586
          %v801 = vmul.f32 %v785, %v586
          %v802 = vadd.f32 %v798, %v800
          %v803 = vadd.f32 %v799, %v801
          %v804 = vmul.f32 %v788, %v591
          %v805 = vmul.f32 %v789, %v591
          %v806 = vadd.f32 %v802, %v804
          %v807 = vadd.f32 %v803, %v805
          %v808 = vadd.f32 %v806, %v596
          %v809 = vadd.f32 %v807, %v596
          %v810 = vmax.f32 %v808, 0.0
          %v811 = vmax.f32 %v809, 0.0
          %v812 = vmul.f32 %v810, %v601
          %v813 = vmul.f32 %v811, %v601
          %v814 = vmul.f32 %v772, %v604
          %v815 = vmul.f32 %v773, %v604
          %v816 = vmul.f32 %v776, %v607
          %v817 = vmul.f32 %v777, %v607
          %v818 = vadd.f32 %v814, %v816
          %v819 = vadd.f32 %v815, %v817
          %v820 = vmul.f32 %v780, %v612
          %v821 = vmul.f32 %v781, %v612
          %v822 = vadd.f32 %v818, %v820
          %v823 = vadd.f32 %v819, %v821
          %v824 = vmul.f32 %v784, %v617
          %v825 = vmul.f32 %v785, %v617
          %v826 = vadd.f32 %v822, %v824
          %v827 = vadd.f32 %v823, %v825
          %v828 = vmul.f32 %v788, %v622
          %v829 = vmul.f32 %v789, %v622
          %v830 = vadd.f32 %v826, %v828
          %v831 = vadd.f32 %v827, %v829
          %v832 = vadd.f32 %v830, %v627
          %v833 = vadd.f32 %v831, %v627
          %v834 = vmax.f32 %v832, 0.0
          %v835 = vmax.f32 %v833, 0.0
          %v836 = vmul.f32 %v834, %v632
          %v837 = vmul.f32 %v835, %v632
          %v838 = vadd.f32 %v812, %v836
          %v839 = vadd.f32 %v813, %v837
          %v840 = vmul.f32 %v772, %v637
          %v841 = vmul.f32 %v773, %v637
          %v842 = vmul.f32 %v776, %v640
          %v843 = vmul.f32 %v777, %v640
          %v844 = vadd.f32 %v840, %v842
          %v845 = vadd.f32 %v841, %v843
          %v846 = vmul.f32 %v780, %v645
          %v847 = vmul.f32 %v781, %v645
          %v848 = vadd.f32 %v844, %v846
          %v849 = vadd.f32 %v845, %v847
          %v850 = vmul.f32 %v784, %v650
          %v851 = vmul.f32 %v785, %v650
          %v852 = vadd.f32 %v848, %v850
          %v853 = vadd.f32 %v849, %v851
          %v854 = vmul.f32 %v788, %v655
          %v855 = vmul.f32 %v789, %v655
          %v856 = vadd.f32 %v852, %v854
          %v857 = vadd.f32 %v853, %v855
          %v858 = vadd.f32 %v856, %v660
          %v859 = vadd.f32 %v857, %v660
          %v860 = vmax.f32 %v858, 0.0
          %v861 = vmax.f32 %v859, 0.0
          %v862 = vmul.f32 %v860, %v665
          %v863 = vmul.f32 %v861, %v665
          %v864 = vadd.f32 %v838, %v862
          %v865 = vadd.f32 %v839, %v863
          %v866 = vmul.f32 %v772, %v670
          %v867 = vmul.f32 %v773, %v670
          %v868 = vmul.f32 %v776, %v673
          %v869 = vmul.f32 %v777, %v673
          %v870 = vadd.f32 %v866, %v868
          %v871 = vadd.f32 %v867, %v869
          %v872 = vmul.f32 %v780, %v678
          %v873 = vmul.f32 %v781, %v678
          %v874 = vadd.f32 %v870, %v872
          %v875 = vadd.f32 %v871, %v873
          %v876 = vmul.f32 %v784, %v683
          %v877 = vmul.f32 %v785, %v683
          %v878 = vadd.f32 %v874, %v876
          %v879 = vadd.f32 %v875, %v877
          %v880 = vmul.f32 %v788, %v688
          %v881 = vmul.f32 %v789, %v688
          %v882 = vadd.f32 %v878, %v880
          %v883 = vadd.f32 %v879, %v881
          %v884 = vadd.f32 %v882, %v693
          %v885 = vadd.f32 %v883, %v693
          %v886 = vmax.f32 %v884, 0.0
          %v887 = vmax.f32 %v885, 0.0
          %v888 = vmul.f32 %v886, %v698
          %v889 = vmul.f32 %v887, %v698
          %v890 = vadd.f32 %v864, %v888
          %v891 = vadd.f32 %v865, %v889
          %v892 = vmul.f32 %v772, %v703
          %v893 = vmul.f32 %v773, %v703
          %v894 = vmul.f32 %v776, %v706
          %v895 = vmul.f32 %v777, %v706
          %v896 = vadd.f32 %v892, %v894
          %v897 = vadd.f32 %v893, %v895
          %v898 = vmul.f32 %v780, %v711
          %v899 = vmul.f32 %v781, %v711
          %v900 = vadd.f32 %v896, %v898
          %v901 = vadd.f32 %v897, %v899
          %v902 = vmul.f32 %v784, %v716
          %v903 = vmul.f32 %v785, %v716
          %v904 = vadd.f32 %v900, %v902
          %v905 = vadd.f32 %v901, %v903
          %v906 = vmul.f32 %v788, %v721
          %v907 = vmul.f32 %v789, %v721
          %v908 = vadd.f32 %v904, %v906
          %v909 = vadd.f32 %v905, %v907
          %v910 = vrot.slane %v890, 4
          %v911 = vmax.f32 %v890, %v910
          %v912 = vrot.slane %v911, 2
          %v913 = vmax.f32 %v911, %v912
          %v914 = vrot.slane %v913, 1
          %v915 = vmax.f32 %v913, %v914
          %v916 = vrot.slane %v891, 4
          %v917 = vmax.f32 %v891, %v916
          %v918 = vrot.slane %v917, 2
          %v919 = vmax.f32 %v917, %v918
          %v920 = vrot.slane %v919, 1
          %v921 = vmax.f32 %v919, %v920
          %v922 = vmax.f32 %v731, %v915
          %v923 = vmax.f32 %v737, %v921
          %v924 = vsub.f32 %v731, %v922
          %v925 = vsub.f32 %v737, %v923
          %v926 = vmul.f32 %v924, 1.442695
          %v927 = vpow.pop %v926
          %v928 = vmul.f32 %v925, 1.442695
          %v929 = vpow.pop %v928
          %v930 = vsub.f32 %v890, %v922
          %v931 = vsub.f32 %v891, %v923
          %v932 = vmul.f32 %v930, 1.442695
          %v933 = vpow.pop %v932
          %v934 = vmul.f32 %v931, 1.442695
          %v935 = vpow.pop %v934
          %v936 = vmul.f32 %v927, %v749
          %v937 = vmul.f32 %v929, %v755
          %v938 = vrot.slane %v933, 4
          %v939 = vadd.f32 %v933, %v938
          %v940 = vrot.slane %v939, 2
          %v941 = vadd.f32 %v939, %v940
          %v942 = vrot.slane %v941, 1
          %v943 = vadd.f32 %v941, %v942
          %v944 = vrot.slane %v935, 4
          %v945 = vadd.f32 %v935, %v944
          %v946 = vrot.slane %v945, 2
          %v947 = vadd.f32 %v945, %v946
          %v948 = vrot.slane %v947, 1
          %v949 = vadd.f32 %v947, %v948
          %v950 = vadd.f32 %v936, %v943
          %v951 = vadd.f32 %v937, %v949
          %v952 = vmul.f32 %v927, %v763
          %v953 = vmul.f32 %v929, %v769
          %v954 = vmul.f32 %v933, %v908
          %v955 = vmul.f32 %v935, %v909
          %v956 = vrot.slane %v954, 4
          %v957 = vadd.f32 %v954, %v956
          %v958 = vrot.slane %v957, 2
          %v959 = vadd.f32 %v957, %v958
          %v960 = vrot.slane %v959, 1
          %v961 = vadd.f32 %v959, %v960
          %v962 = vrot.slane %v955, 4
          %v963 = vadd.f32 %v955, %v962
          %v964 = vrot.slane %v963, 2
          %v965 = vadd.f32 %v963, %v964
          %v966 = vrot.slane %v965, 1
          %v967 = vadd.f32 %v965, %v966
          %v968 = vadd.f32 %v952, %v961
          %v969 = vadd.f32 %v953, %v967
          %v970 = vrot.slane %v523, 5
          %v971 = vrot.slane %v524, 5
          %v972 = vmul.f32 %v523, %v970
          %v973 = vmul.f32 %v524, %v971
          %v974 = vrot.slane %v530, 5
          %v975 = vrot.slane %v531, 5
          %v976 = vmul.f32 %v530, %v974
          %v977 = vmul.f32 %v531, %v975
          %v978 = vrot.slane %v537, 5
          %v979 = vrot.slane %v538, 5
          %v980 = vmul.f32 %v537, %v978
          %v981 = vmul.f32 %v538, %v979
          %v982 = vrot.slane %v544, 5
          %v983 = vrot.slane %v545, 5
          %v984 = vmul.f32 %v544, %v982
          %v985 = vmul.f32 %v545, %v983
          %v986 = vrot.slane %v551, 5
          %v987 = vrot.slane %v552, 5
          %v988 = vmul.f32 %v551, %v986
          %v989 = vmul.f32 %v552, %v987
          %v990 = vmul.f32 %v972, %v573
          %v991 = vmul.f32 %v973, %v573
          %v992 = vmul.f32 %v976, %v576
          %v993 = vmul.f32 %v977, %v576
          %v994 = vadd.f32 %v990, %v992
          %v995 = vadd.f32 %v991, %v993
          %v996 = vmul.f32 %v980, %v581
          %v997 = vmul.f32 %v981, %v581
          %v998 = vadd.f32 %v994, %v996
          %v999 = vadd.f32 %v995, %v997
          %v1000 = vmul.f32 %v984, %v586
          %v1001 = vmul.f32 %v985, %v586
          %v1002 = vadd.f32 %v998, %v1000
          %v1003 = vadd.f32 %v999, %v1001
          %v1004 = vmul.f32 %v988, %v591
          %v1005 = vmul.f32 %v989, %v591
          %v1006 = vadd.f32 %v1002, %v1004
          %v1007 = vadd.f32 %v1003, %v1005
          %v1008 = vadd.f32 %v1006, %v596
          %v1009 = vadd.f32 %v1007, %v596
          %v1010 = vmax.f32 %v1008, 0.0
          %v1011 = vmax.f32 %v1009, 0.0
          %v1012 = vmul.f32 %v1010, %v601
          %v1013 = vmul.f32 %v1011, %v601
          %v1014 = vmul.f32 %v972, %v604
          %v1015 = vmul.f32 %v973, %v604
          %v1016 = vmul.f32 %v976, %v607
          %v1017 = vmul.f32 %v977, %v607
          %v1018 = vadd.f32 %v1014, %v1016
          %v1019 = vadd.f32 %v1015, %v1017
          %v1020 = vmul.f32 %v980, %v612
          %v1021 = vmul.f32 %v981, %v612
          %v1022 = vadd.f32 %v1018, %v1020
          %v1023 = vadd.f32 %v1019, %v1021
          %v1024 = vmul.f32 %v984, %v617
          %v1025 = vmul.f32 %v985, %v617
          %v1026 = vadd.f32 %v1022, %v1024
          %v1027 = vadd.f32 %v1023, %v1025
          %v1028 = vmul.f32 %v988, %v622
          %v1029 = vmul.f32 %v989, %v622
          %v1030 = vadd.f32 %v1026, %v1028
          %v1031 = vadd.f32 %v1027, %v1029
          %v1032 = vadd.f32 %v1030, %v627
          %v1033 = vadd.f32 %v1031, %v627
          %v1034 = vmax.f32 %v1032, 0.0
          %v1035 = vmax.f32 %v1033, 0.0
          %v1036 = vmul.f32 %v1034, %v632
          %v1037 = vmul.f32 %v1035, %v632
          %v1038 = vadd.f32 %v1012, %v1036
          %v1039 = vadd.f32 %v1013, %v1037
          %v1040 = vmul.f32 %v972, %v637
          %v1041 = vmul.f32 %v973, %v637
          %v1042 = vmul.f32 %v976, %v640
          %v1043 = vmul.f32 %v977, %v640
          %v1044 = vadd.f32 %v1040, %v1042
          %v1045 = vadd.f32 %v1041, %v1043
          %v1046 = vmul.f32 %v980, %v645
          %v1047 = vmul.f32 %v981, %v645
          %v1048 = vadd.f32 %v1044, %v1046
          %v1049 = vadd.f32 %v1045, %v1047
          %v1050 = vmul.f32 %v984, %v650
          %v1051 = vmul.f32 %v985, %v650
          %v1052 = vadd.f32 %v1048, %v1050
          %v1053 = vadd.f32 %v1049, %v1051
          %v1054 = vmul.f32 %v988, %v655
          %v1055 = vmul.f32 %v989, %v655
          %v1056 = vadd.f32 %v1052, %v1054
          %v1057 = vadd.f32 %v1053, %v1055
          %v1058 = vadd.f32 %v1056, %v660
          %v1059 = vadd.f32 %v1057, %v660
          %v1060 = vmax.f32 %v1058, 0.0
          %v1061 = vmax.f32 %v1059, 0.0
          %v1062 = vmul.f32 %v1060, %v665
          %v1063 = vmul.f32 %v1061, %v665
          %v1064 = vadd.f32 %v1038, %v1062
          %v1065 = vadd.f32 %v1039, %v1063
          %v1066 = vmul.f32 %v972, %v670
          %v1067 = vmul.f32 %v973, %v670
          %v1068 = vmul.f32 %v976, %v673
          %v1069 = vmul.f32 %v977, %v673
          %v1070 = vadd.f32 %v1066, %v1068
          %v1071 = vadd.f32 %v1067, %v1069
          %v1072 = vmul.f32 %v980, %v678
          %v1073 = vmul.f32 %v981, %v678
          %v1074 = vadd.f32 %v1070, %v1072
          %v1075 = vadd.f32 %v1071, %v1073
          %v1076 = vmul.f32 %v984, %v683
          %v1077 = vmul.f32 %v985, %v683
          %v1078 = vadd.f32 %v1074, %v1076
          %v1079 = vadd.f32 %v1075, %v1077
          %v1080 = vmul.f32 %v988, %v688
          %v1081 = vmul.f32 %v989, %v688
          %v1082 = vadd.f32 %v1078, %v1080
          %v1083 = vadd.f32 %v1079, %v1081
          %v1084 = vadd.f32 %v1082, %v693
          %v1085 = vadd.f32 %v1083, %v693
          %v1086 = vmax.f32 %v1084, 0.0
          %v1087 = vmax.f32 %v1085, 0.0
          %v1088 = vmul.f32 %v1086, %v698
          %v1089 = vmul.f32 %v1087, %v698
          %v1090 = vadd.f32 %v1064, %v1088
          %v1091 = vadd.f32 %v1065, %v1089
          %v1092 = vmul.f32 %v972, %v703
          %v1093 = vmul.f32 %v973, %v703
          %v1094 = vmul.f32 %v976, %v706
          %v1095 = vmul.f32 %v977, %v706
          %v1096 = vadd.f32 %v1092, %v1094
          %v1097 = vadd.f32 %v1093, %v1095
          %v1098 = vmul.f32 %v980, %v711
          %v1099 = vmul.f32 %v981, %v711
          %v1100 = vadd.f32 %v1096, %v1098
          %v1101 = vadd.f32 %v1097, %v1099
          %v1102 = vmul.f32 %v984, %v716
          %v1103 = vmul.f32 %v985, %v716
          %v1104 = vadd.f32 %v1100, %v1102
          %v1105 = vadd.f32 %v1101, %v1103
          %v1106 = vmul.f32 %v988, %v721
          %v1107 = vmul.f32 %v989, %v721
          %v1108 = vadd.f32 %v1104, %v1106
          %v1109 = vadd.f32 %v1105, %v1107
          %v1110 = vrot.slane %v1090, 4
          %v1111 = vmax.f32 %v1090, %v1110
          %v1112 = vrot.slane %v1111, 2
          %v1113 = vmax.f32 %v1111, %v1112
          %v1114 = vrot.slane %v1113, 1
          %v1115 = vmax.f32 %v1113, %v1114
          %v1116 = vrot.slane %v1091, 4
          %v1117 = vmax.f32 %v1091, %v1116
          %v1118 = vrot.slane %v1117, 2
          %v1119 = vmax.f32 %v1117, %v1118
          %v1120 = vrot.slane %v1119, 1
          %v1121 = vmax.f32 %v1119, %v1120
          %v1122 = vmax.f32 %v922, %v1115
          %v1123 = vmax.f32 %v923, %v1121
          %v1124 = vsub.f32 %v922, %v1122
          %v1125 = vsub.f32 %v923, %v1123
          %v1126 = vmul.f32 %v1124, 1.442695
          %v1127 = vpow.pop %v1126
          %v1128 = vmul.f32 %v1125, 1.442695
          %v1129 = vpow.pop %v1128
          %v1130 = vsub.f32 %v1090, %v1122
          %v1131 = vsub.f32 %v1091, %v1123
          %v1132 = vmul.f32 %v1130, 1.442695
          %v1133 = vpow.pop %v1132
          %v1134 = vmul.f32 %v1131, 1.442695
          %v1135 = vpow.pop %v1134
          %v1136 = vmul.f32 %v1127, %v950
          %v1137 = vmul.f32 %v1129, %v951
          %v1138 = vrot.slane %v1133, 4
          %v1139 = vadd.f32 %v1133, %v1138
          %v1140 = vrot.slane %v1139, 2
          %v1141 = vadd.f32 %v1139, %v1140
          %v1142 = vrot.slane %v1141, 1
          %v1143 = vadd.f32 %v1141, %v1142
          %v1144 = vrot.slane %v1135, 4
          %v1145 = vadd.f32 %v1135, %v1144
          %v1146 = vrot.slane %v1145, 2
          %v1147 = vadd.f32 %v1145, %v1146
          %v1148 = vrot.slane %v1147, 1
          %v1149 = vadd.f32 %v1147, %v1148
          %v1150 = vadd.f32 %v1136, %v1143
          %v1151 = vadd.f32 %v1137, %v1149
          %v1152 = vmul.f32 %v1127, %v968
          %v1153 = vmul.f32 %v1129, %v969
          %v1154 = vmul.f32 %v1133, %v1108
          %v1155 = vmul.f32 %v1135, %v1109
          %v1156 = vrot.slane %v1154, 4
          %v1157 = vadd.f32 %v1154, %v1156
          %v1158 = vrot.slane %v1157, 2
          %v1159 = vadd.f32 %v1157, %v1158
          %v1160 = vrot.slane %v1159, 1
          %v1161 = vadd.f32 %v1159, %v1160
          %v1162 = vrot.slane %v1155, 4
          %v1163 = vadd.f32 %v1155, %v1162
          %v1164 = vrot.slane %v1163, 2
          %v1165 = vadd.f32 %v1163, %v1164
          %v1166 = vrot.slane %v1165, 1
          %v1167 = vadd.f32 %v1165, %v1166
          %v1168 = vadd.f32 %v1152, %v1161
          %v1169 = vadd.f32 %v1153, %v1167
          %v1170 = vrot.slane %v523, 4
          %v1171 = vrot.slane %v524, 4
          %v1172 = vmul.f32 %v523, %v1170
          %v1173 = vmul.f32 %v524, %v1171
          %v1174 = vrot.slane %v530, 4
          %v1175 = vrot.slane %v531, 4
          %v1176 = vmul.f32 %v530, %v1174
          %v1177 = vmul.f32 %v531, %v1175
          %v1178 = vrot.slane %v537, 4
          %v1179 = vrot.slane %v538, 4
          %v1180 = vmul.f32 %v537, %v1178
          %v1181 = vmul.f32 %v538, %v1179
          %v1182 = vrot.slane %v544, 4
          %v1183 = vrot.slane %v545, 4
          %v1184 = vmul.f32 %v544, %v1182
          %v1185 = vmul.f32 %v545, %v1183
          %v1186 = vrot.slane %v551, 4
          %v1187 = vrot.slane %v552, 4
          %v1188 = vmul.f32 %v551, %v1186
          %v1189 = vmul.f32 %v552, %v1187
          %v1190 = vmul.f32 %v1172, %v573
          %v1191 = vmul.f32 %v1173, %v573
          %v1192 = vmul.f32 %v1176, %v576
          %v1193 = vmul.f32 %v1177, %v576
          %v1194 = vadd.f32 %v1190, %v1192
          %v1195 = vadd.f32 %v1191, %v1193
          %v1196 = vmul.f32 %v1180, %v581
          %v1197 = vmul.f32 %v1181, %v581
          %v1198 = vadd.f32 %v1194, %v1196
          %v1199 = vadd.f32 %v1195, %v1197
          %v1200 = vmul.f32 %v1184, %v586
          %v1201 = vmul.f32 %v1185, %v586
          %v1202 = vadd.f32 %v1198, %v1200
          %v1203 = vadd.f32 %v1199, %v1201
          %v1204 = vmul.f32 %v1188, %v591
          %v1205 = vmul.f32 %v1189, %v591
          %v1206 = vadd.f32 %v1202, %v1204
          %v1207 = vadd.f32 %v1203, %v1205
          %v1208 = vadd.f32 %v1206, %v596
          %v1209 = vadd.f32 %v1207, %v596
          %v1210 = vmax.f32 %v1208, 0.0
          %v1211 = vmax.f32 %v1209, 0.0
          %v1212 = vmul.f32 %v1210, %v601
          %v1213 = vmul.f32 %v1211, %v601
          %v1214 = vmul.f32 %v1172, %v604
          %v1215 = vmul.f32 %v1173, %v604
          %v1216 = vmul.f32 %v1176, %v607
          %v1217 = vmul.f32 %v1177, %v607
          %v1218 = vadd.f32 %v1214, %v1216
          %v1219 = vadd.f32 %v1215, %v1217
          %v1220 = vmul.f32 %v1180, %v612
          %v1221 = vmul.f32 %v1181, %v612
          %v1222 = vadd.f32 %v1218, %v1220
          %v1223 = vadd.f32 %v1219, %v1221
          %v1224 = vmul.f32 %v1184, %v617
          %v1225 = vmul.f32 %v1185, %v617
          %v1226 = vadd.f32 %v1222, %v1224
          %v1227 = vadd.f32 %v1223, %v1225
          %v1228 = vmul.f32 %v1188, %v622
          %v1229 = vmul.f32 %v1189, %v622
          %v1230 = vadd.f32 %v1226, %v1228
          %v1231 = vadd.f32 %v1227, %v1229
          %v1232 = vadd.f32 %v1230, %v627
          %v1233 = vadd.f32 %v1231, %v627
          %v1234 = vmax.f32 %v1232, 0.0
          %v1235 = vmax.f32 %v1233, 0.0
          %v1236 = vmul.f32 %v1234, %v632
          %v1237 = vmul.f32 %v1235, %v632
          %v1238 = vadd.f32 %v1212, %v1236
          %v1239 = vadd.f32 %v1213, %v1237
          %v1240 = vmul.f32 %v1172, %v637
          %v1241 = vmul.f32 %v1173, %v637
          %v1242 = vmul.f32 %v1176, %v640
          %v1243 = vmul.f32 %v1177, %v640
          %v1244 = vadd.f32 %v1240, %v1242
          %v1245 = vadd.f32 %v1241, %v1243
          %v1246 = vmul.f32 %v1180, %v645
          %v1247 = vmul.f32 %v1181, %v645
          %v1248 = vadd.f32 %v1244, %v1246
          %v1249 = vadd.f32 %v1245, %v1247
          %v1250 = vmul.f32 %v1184, %v650
          %v1251 = vmul.f32 %v1185, %v650
          %v1252 = vadd.f32 %v1248, %v1250
          %v1253 = vadd.f32 %v1249, %v1251
          %v1254 = vmul.f32 %v1188, %v655
          %v1255 = vmul.f32 %v1189, %v655
          %v1256 = vadd.f32 %v1252, %v1254
          %v1257 = vadd.f32 %v1253, %v1255
          %v1258 = vadd.f32 %v1256, %v660
          %v1259 = vadd.f32 %v1257, %v660
          %v1260 = vmax.f32 %v1258, 0.0
          %v1261 = vmax.f32 %v1259, 0.0
          %v1262 = vmul.f32 %v1260, %v665
          %v1263 = vmul.f32 %v1261, %v665
          %v1264 = vadd.f32 %v1238, %v1262
          %v1265 = vadd.f32 %v1239, %v1263
          %v1266 = vmul.f32 %v1172, %v670
          %v1267 = vmul.f32 %v1173, %v670
          %v1268 = vmul.f32 %v1176, %v673
          %v1269 = vmul.f32 %v1177, %v673
          %v1270 = vadd.f32 %v1266, %v1268
          %v1271 = vadd.f32 %v1267, %v1269
          %v1272 = vmul.f32 %v1180, %v678
          %v1273 = vmul.f32 %v1181, %v678
          %v1274 = vadd.f32 %v1270, %v1272
          %v1275 = vadd.f32 %v1271, %v1273
          %v1276 = vmul.f32 %v1184, %v683
          %v1277 = vmul.f32 %v1185, %v683
          %v1278 = vadd.f32 %v1274, %v1276
          %v1279 = vadd.f32 %v1275, %v1277
          %v1280 = vmul.f32 %v1188, %v688
          %v1281 = vmul.f32 %v1189, %v688
          %v1282 = vadd.f32 %v1278, %v1280
          %v1283 = vadd.f32 %v1279, %v1281
          %v1284 = vadd.f32 %v1282, %v693
          %v1285 = vadd.f32 %v1283, %v693
          %v1286 = vmax.f32 %v1284, 0.0
          %v1287 = vmax.f32 %v1285, 0.0
          %v1288 = vmul.f32 %v1286, %v698
          %v1289 = vmul.f32 %v1287, %v698
          %v1290 = vadd.f32 %v1264, %v1288
          %v1291 = vadd.f32 %v1265, %v1289
          %v1292 = vmul.f32 %v1172, %v703
          %v1293 = vmul.f32 %v1173, %v703
          %v1294 = vmul.f32 %v1176, %v706
          %v1295 = vmul.f32 %v1177, %v706
          %v1296 = vadd.f32 %v1292, %v1294
          %v1297 = vadd.f32 %v1293, %v1295
          %v1298 = vmul.f32 %v1180, %v711
          %v1299 = vmul.f32 %v1181, %v711
          %v1300 = vadd.f32 %v1296, %v1298
          %v1301 = vadd.f32 %v1297, %v1299
          %v1302 = vmul.f32 %v1184, %v716
          %v1303 = vmul.f32 %v1185, %v716
          %v1304 = vadd.f32 %v1300, %v1302
          %v1305 = vadd.f32 %v1301, %v1303
          %v1306 = vmul.f32 %v1188, %v721
          %v1307 = vmul.f32 %v1189, %v721
          %v1308 = vadd.f32 %v1304, %v1306
          %v1309 = vadd.f32 %v1305, %v1307
          %v1310 = vrot.slane %v1290, 4
          %v1311 = vmax.f32 %v1290, %v1310
          %v1312 = vrot.slane %v1311, 2
          %v1313 = vmax.f32 %v1311, %v1312
          %v1314 = vrot.slane %v1313, 1
          %v1315 = vmax.f32 %v1313, %v1314
          %v1316 = vrot.slane %v1291, 4
          %v1317 = vmax.f32 %v1291, %v1316
          %v1318 = vrot.slane %v1317, 2
          %v1319 = vmax.f32 %v1317, %v1318
          %v1320 = vrot.slane %v1319, 1
          %v1321 = vmax.f32 %v1319, %v1320
          %v1322 = vmax.f32 %v1122, %v1315
          %v1323 = vmax.f32 %v1123, %v1321
          %v1324 = vsub.f32 %v1122, %v1322
          %v1325 = vsub.f32 %v1123, %v1323
          %v1326 = vmul.f32 %v1324, 1.442695
          %v1327 = vpow.pop %v1326
          %v1328 = vmul.f32 %v1325, 1.442695
          %v1329 = vpow.pop %v1328
          %v1330 = vsub.f32 %v1290, %v1322
          %v1331 = vsub.f32 %v1291, %v1323
          %v1332 = vmul.f32 %v1330, 1.442695
          %v1333 = vpow.pop %v1332
          %v1334 = vmul.f32 %v1331, 1.442695
          %v1335 = vpow.pop %v1334
          %v1336 = vmul.f32 %v1333, 0.5
          %v1337 = vmul.f32 %v1335, 0.5
          %v1338 = vmul.f32 %v1327, %v1150
          %v1339 = vmul.f32 %v1329, %v1151
          %v1340 = vrot.slane %v1336, 4
          %v1341 = vadd.f32 %v1336, %v1340
          %v1342 = vrot.slane %v1341, 2
          %v1343 = vadd.f32 %v1341, %v1342
          %v1344 = vrot.slane %v1343, 1
          %v1345 = vadd.f32 %v1343, %v1344
          %v1346 = vrot.slane %v1337, 4
          %v1347 = vadd.f32 %v1337, %v1346
          %v1348 = vrot.slane %v1347, 2
          %v1349 = vadd.f32 %v1347, %v1348
          %v1350 = vrot.slane %v1349, 1
          %v1351 = vadd.f32 %v1349, %v1350
          %v1352 = vadd.f32 %v1338, %v1345
          %v1353 = vadd.f32 %v1339, %v1351
          %v1354 = vmul.f32 %v1327, %v1168
          %v1355 = vmul.f32 %v1329, %v1169
          %v1356 = vmul.f32 %v1336, %v1308
          %v1357 = vmul.f32 %v1337, %v1309
          %v1358 = vrot.slane %v1356, 4
          %v1359 = vadd.f32 %v1356, %v1358
          %v1360 = vrot.slane %v1359, 2
          %v1361 = vadd.f32 %v1359, %v1360
          %v1362 = vrot.slane %v1361, 1
          %v1363 = vadd.f32 %v1361, %v1362
          %v1364 = vrot.slane %v1357, 4
          %v1365 = vadd.f32 %v1357, %v1364
          %v1366 = vrot.slane %v1365, 2
          %v1367 = vadd.f32 %v1365, %v1366
          %v1368 = vrot.slane %v1367, 1
          %v1369 = vadd.f32 %v1367, %v1368
          %v1370 = vadd.f32 %v1354, %v1363
          %v1371 = vadd.f32 %v1355, %v1369
          %v1372 = vrcp.pop %v1352
          %v1373 = vmul.f32 %v1370, %v1372
          %v1374 = vrcp.pop %v1353
          %v1375 = vmul.f32 %v1371, %v1374
          %v1376 = vstv %s487
          %v1377 = vadd.f32 %v1376, %v512
          %v1378 = vadd.f32 %v1376, %v518
          %v1379 = vadd.f32 %v1377, %v1373
          %v1380 = vadd.f32 %v1378, %v1375
          %v1381 = vsub.f32 0.0, %v1379
          %v1382 = vsub.f32 0.0, %v1380
          %v1383 = vmul.f32 %v1381, 1.442695
          %v1384 = vpow.pop %v1383
          %v1385 = vmul.f32 %v1382, 1.442695
          %v1386 = vpow.pop %v1385
          %v1387 = vadd.f32 %v1384, 1.0
          %v1388 = vadd.f32 %v1386, 1.0
          %v1389 = vrcp.pop %v1387
          %v1390 = vmul.f32 1.0, %v1389
          %v1391 = vrcp.pop %v1388
          %v1392 = vmul.f32 1.0, %v1391
          %v1395 = vcombine.low %v1390, %v1392
          %v1397 = vunpack.c.l.s4 1966171168
          %v1398 = vunpack.c.0.s8 %v1397
          %v1399 = vlaneseq
          %v1400 = vshrl.u32 %v1399, 7
          %v1401 = vsub.s32 %v1398, %v1400
          %v1402 = vrot.slane %v1395, %v1401
          %v1404 = vunpack.c.l.s4 1966171168
          %v1405 = vunpack.c.0.s8 %v1404
          %v1406 = vlaneseq
          %v1407 = vshrl.u32 %v1406, 7
          %v1408 = vsub.s32 %v1405, %v1407
          %v1409 = vrot.slane %v1402, %v1408
          %s1411 = scalar_lea.vmem %s449, %s495 [#allocation16]
          %v1412 = vlaneseq
          %vm1413 = vcmp.ge.s32.totalorder %v1412, 0
          %vm1414 = vcmp.lt.s32.totalorder %v1412, 256
          %vm1415 = vmand %vm1413, %vm1414
          %1416 = vst.msk [vmem:[%s1411] sm:$0x3] %vm1415, %v1409
        $region85: #{tpu_custom_call.1} parent=51 // loop_footer
          %s493 = sadd.s32 1, %s489
        $region86: #{tpu_custom_call.1} parent=51 // loop_footer_branch
          %488 = sbr.rel target = $region82
        $region87: #{tpu_custom_call.1} parent=51 // loop_exit
          _
        %s1417 = sand.u32 %s223, 1
        %s1418 = scalar_lea.sflag [#allocation5], %s1417
        %s1419 = sand.u32 %s223, 1
        %s1420 = smul.addr %s1419, 4
        %s1421 = scalar_lea.vmem [#allocation16], %s1420
        // Predicated region
        $region88: #{tpu_custom_call.1} parent=51 // pred_check
          %p1422 = pneg %p233
        $region89: #{tpu_custom_call.1} parent=51 // pred_check_branch
          %1424 = sbr.rel (%p1422) target = $region91
        $region90: #{tpu_custom_call.1} parent=51 // pred_region
          %s1425 = smul.u32 4, %s32
          %s1427 = ssub.s32 64, 64
          %1428 = vsyncadd %s1418, %s1427
          %s1429 = smul.addr %s1425, 16
          %s1430 = scalar_lea.hbm %s8, %s1429
          %s1432 = sshll.u32 %s1421, 4
          %s1433 = int_to_ptr.vmem [resolvable:$true] %s1432
          %1435 = dma.vmem_to_hbm [thread:$0]  %s1433, 64, %s1430, %s1418
        $region91: #{tpu_custom_call.1} parent=51 // pred_fallthru
          _
      $region52: #{tpu_custom_call.1} parent=5 // pred_fallthru
        _
      %p1436 = scmp.le.s32.totalorder 2, %s27
      // Predicated region
      $region92: #{tpu_custom_call.1} parent=5 // pred_check
        %p1437 = pneg %p1436
      $region93: #{tpu_custom_call.1} parent=5 // pred_check_branch
        %1439 = sbr.rel (%p1437) target = $region95
      $region94: #{tpu_custom_call.1} parent=5 // pred_region
        %s1440 = ssub.s32 %s27, 2
        // Predicated region
        $region96: #{tpu_custom_call.1} parent=94 // pred_check
          %p1441 = pneg %p239
        $region97: #{tpu_custom_call.1} parent=94 // pred_check_branch
          %1443 = sbr.rel (%p1441) target = $region99
        $region98: #{tpu_custom_call.1} parent=94 // pred_region
          %s1444 = sand.u32 %s224, 1
          %s1445 = scalar_lea.sflag [#allocation5], %s1444
          %s1446 = sand.u32 %s224, 1
          %s1447 = smul.addr %s1446, 4
          %s1448 = scalar_lea.vmem [#allocation16], %s1447
          %1449 = dma.done %s1445, 64
        $region99: #{tpu_custom_call.1} parent=94 // pred_fallthru
          _
      $region95: #{tpu_custom_call.1} parent=5 // pred_fallthru
        _
    $region6: #{tpu_custom_call.1} parent=1 // loop_footer
      %s31 = sadd.s32 1, %s27
    $region7: #{tpu_custom_call.1} parent=1 // loop_footer_branch
      %26 = sbr.rel target = $region3
    $region8: #{tpu_custom_call.1} parent=1 // loop_exit
      _
    %1450 = vsyncpa [#allocation4], 1
    %s1451 = scalar_lea.sflag [#allocation4], 1
    %1452 = vsyncpa %s1451, 1
    %1453 = vsyncpa [#allocation8], 1
    %s1454 = scalar_lea.sflag [#allocation8], 1
    %1455 = vsyncpa %s1454, 1
    %1456 = vsyncpa [#allocation5], 1
    %s1457 = scalar_lea.sflag [#allocation5], 1
    %1458 = vsyncpa %s1457, 1
    %1459 = vsyncpa [#allocation6], 1
    %s1460 = scalar_lea.sflag [#allocation6], 1
    %1461 = vsyncpa %s1460, 1
    %1462 = vsyncpa [#allocation12], 1
    %1463 = vsyncpa [#allocation15], 1

</llo_original>
